<compile_context>
chip_gen: v7x
topology: tpu7x:2x2x1
jax: 0.10.0
libtpu: 0.0.40
codegen_flags: <defaults>
</compile_context>

<pallas_src>
import functools

import jax
import jax.numpy as jnp
from jax.experimental import pallas as pl
from jax.experimental.pallas import tpu as pltpu

_PT = 8          # top-padding rows in the VMEM scratch (8-aligned interior store)
_BN_EPS = 1e-5


def _sepconv_kernel(x_ref, wb1_ref, g1_ref, b1_ref, Gm1_ref, T1_ref,
                    wb2_ref, g2_ref, b2_ref, Gm2_ref, T2_ref,
                    out_ref, pad_ref, *, K, padding, N,
                    H, W, Cin, Cout, Ho1, Wo1, Ho2, Wo2):
    """Fused SepConv: two (ReLU -> depthwise+pointwise conv -> BN) stages.

    The stage-1 activation stays resident in VMEM.

    x_ref:    (N, H, W*Cin)       packed input rows (lane axis = W*Cin)
    wbX_ref:  (K, Wi*Ci, Wo*Co)   banded conv matrices, one per vertical tap
    gX / bX:  (1, Co)             BN affine params
    GmX_ref:  (Wo*Co, Co)         lane -> channel MEAN-pooling matrix (0/1 * 1/cnt)
    TX_ref:   (Co, Wo*Co)         0/1 channel -> lane broadcast matrix
    out_ref:  (N*Ho2, Wo2*Cout)   lane-dense output slab
    pad_ref:  VMEM scratch holding the vertically zero-padded packed rows
    """

    def stage(x3, Hi, Wi, Ci, Ho, Wo, Co,
              wb_ref, g_ref, b_ref, Gm_ref, T_ref, stale_rows):
        # x3: (N, Hi, Wi*Ci) pre-activation.
        relu = jnp.maximum(x3, 0.0)

        # Vertical zero-padding: halo rows come from the single scratch clear
        # at kernel start.  Only halo rows overwritten by a *previous* stage
        # need re-zeroing (static count; zero in the default config).
        if stale_rows > 0:
            pad_ref[:, _PT + Hi:_PT + Hi + stale_rows, :] = jnp.zeros(
                (N, stale_rows, pad_ref.shape[-1]), jnp.float32)
        pad_ref[:, _PT:_PT + Hi, 0:Wi * Ci] = relu

        # Depthwise + pointwise conv as K banded MXU matmuls (one per
        # vertical tap dy).  Horizontal padding is folded into the bands;
        # vertical padding comes from the zero halo rows in the scratch.
        acc = jnp.zeros((N * Ho, Wo * Co), jnp.float32)
        for dy in range(K):
            r0 = _PT - padding + dy
            rows = pad_ref[:, r0:r0 + Ho, 0:Wi * Ci]            # (N, Ho, Wi*Ci)
            acc = acc + jnp.dot(rows.reshape(N * Ho, Wi * Ci), wb_ref[dy],
                                preferred_element_type=jnp.float32)

        # BatchNorm2d, training-mode batch statistics per channel over
        # (N, H, W), computed on the packed lane layout via tiny constant
        # matmuls (no lane-axis reshapes).  Gm has the 1/count baked in.
        Gm = Gm_ref[...]                                         # (Wo*Co, Co)
        T = T_ref[...]                                           # (Co, Wo*Co)
        mean_c = jnp.dot(jnp.sum(acc, axis=0, keepdims=True), Gm,
                         preferred_element_type=jnp.float32)                 # (1, Co)
        cen = acc - jnp.dot(mean_c, T, preferred_element_type=jnp.float32)
        var_c = jnp.dot(jnp.sum(cen * cen, axis=0, keepdims=True), Gm,
                        preferred_element_type=jnp.float32)                  # (1, Co)
        scale_c = g_ref[...] * jax.lax.rsqrt(var_c + _BN_EPS)                # (1, Co)
        scale_l = jnp.dot(scale_c, T, preferred_element_type=jnp.float32)    # (1, Wo*Co)
        shift_l = jnp.dot(b_ref[...], T, preferred_element_type=jnp.float32)
        return cen * scale_l + shift_l                                       # (N*Ho, Wo*Co)

    # Clear the scratch ONCE; both stages' zero halos come from this clear.
    pad_ref[...] = jnp.zeros_like(pad_ref)

    x = x_ref[...].astype(jnp.float32)                                       # (N, H, W*Cin)
    y1 = stage(x, H, W, Cin, Ho1, Wo1, Cin,
               wb1_ref, g1_ref, b1_ref, Gm1_ref, T1_ref, stale_rows=0)
    # Rows of stage-2's bottom halo that stage 1 overwrote (static count).
    stale2 = max(0, min(padding, H - Ho1))
    y2 = stage(y1.reshape(N, Ho1, Wo1 * Cin), Ho1, Wo1, Cin, Ho2, Wo2, Cout,
               wb2_ref, g2_ref, b2_ref, Gm2_ref, T2_ref, stale_rows=stale2)
    out_ref[...] = y2.astype(out_ref.dtype)                                  # (32, 128) lane-dense


def _banded_conv_matrices(dw, pw, Wi, Wo, K, padding):
    """Fold depthwise (K,K,Ci) + pointwise (Ci,Co) into K banded matrices.

    Returns wb of shape (K, Wi*Ci, Wo*Co) with
        wb[dy, xi*Ci+ci, xo*Co+co] = dw[dy, xi-xo+padding, ci] * pw[ci, co]
    whenever 0 <= xi-xo+padding < K (zero otherwise), i.e. the horizontal
    zero-padding of the conv is folded into the band structure.
    """
    Ci = dw.shape[2]
    Co = pw.shape[1]
    wc = dw[:, :, :, None] * pw[None, None, :, :]               # (K, K, Ci, Co)
    xi = jnp.arange(Wi)[:, None]
    xo = jnp.arange(Wo)[None, :]
    dx = xi - xo + padding                                      # (Wi, Wo)
    valid = ((dx >= 0) & (dx < K)).astype(wc.dtype)
    dxc = jnp.clip(dx, 0, K - 1)
    band = wc[:, dxc, :, :] * valid[None, :, :, None, None]     # (K, Wi, Wo, Ci, Co)
    return band.transpose(0, 1, 3, 2, 4).reshape(K, Wi * Ci, Wo * Co)


def init_sepconv_params(key, C_in, C_out, kernel_size):
    """Deterministic parameter init; layouts derived from the torch module."""
    K = kernel_size
    k1, k2, k3, k4 = jax.random.split(key, 4)
    # torch depthwise weight (C, 1, K, K), pointwise weight (Co, Ci, 1, 1)
    dw1 = 0.1 * jax.random.normal(k1, (C_in, 1, K, K), jnp.float32)
    pw1 = 0.1 * jax.random.normal(k2, (C_in, C_in, 1, 1), jnp.float32)
    dw2 = 0.1 * jax.random.normal(k3, (C_in, 1, K, K), jnp.float32)
    pw2 = 0.1 * jax.random.normal(k4, (C_out, C_in, 1, 1), jnp.float32)
    return dict(
        dw1=jnp.transpose(dw1[:, 0], (1, 2, 0)),       # (K, K, C_in)
        pw1=jnp.transpose(pw1[:, :, 0, 0], (1, 0)),    # (C_in, C_in)
        g1=jnp.ones((1, C_in), jnp.float32),
        b1=jnp.zeros((1, C_in), jnp.float32),
        dw2=jnp.transpose(dw2[:, 0], (1, 2, 0)),       # (K, K, C_in)
        pw2=jnp.transpose(pw2[:, :, 0, 0], (1, 0)),    # (C_in, C_out)
        g2=jnp.ones((1, C_out), jnp.float32),
        b2=jnp.zeros((1, C_out), jnp.float32),
    )


def sep_conv(x_nchw, params, *, kernel_size, stride, padding):
    """SepConv forward.  Input/output NCHW to match the PyTorch module."""
    # TODO(synk): only stride=1 is implemented (DARTS reduction cells use stride=2).
    assert stride == 1, "kernel implements stride=1 only"
    assert padding <= _PT
    N, Cin, H, W = x_nchw.shape
    K = kernel_size
    Cout = params["pw2"].shape[1]
    Ho1 = H + 2 * padding - K + 1
    Wo1 = W + 2 * padding - K + 1
    Ho2 = Ho1 + 2 * padding - K + 1
    Wo2 = Wo1 + 2 * padding - K + 1

    # Pack to lane-dense (N, H, W*Cin) rows (pure layout plumbing).
    x_packed = jnp.transpose(x_nchw, (0, 2, 3, 1)).reshape(N, H, W * Cin)

    # Host-side (tiny, parameter-only) transforms: banded conv matrices and
    # the lane<->channel grouping matrices used by the in-kernel BN.  The
    # grouping matrix Gm is pre-scaled by 1/count so the kernel's mean/var
    # reductions need no extra scalar multiplies.
    wb1 = _banded_conv_matrices(params["dw1"], params["pw1"], W, Wo1, K, padding)
    wb2 = _banded_conv_matrices(params["dw2"], params["pw2"], Wo1, Wo2, K, padding)
    G1 = jnp.tile(jnp.eye(Cin, dtype=jnp.float32), (Wo1, 1))    # (Wo1*Cin, Cin)
    G2 = jnp.tile(jnp.eye(Cout, dtype=jnp.float32), (Wo2, 1))   # (Wo2*Cout, Cout)
    Gm1 = G1 * (1.0 / float(N * Ho1 * Wo1))
    Gm2 = G2 * (1.0 / float(N * Ho2 * Wo2))
    T1 = G1.T
    T2 = G2.T

    scratch_rows = max(H, Ho1) + _PT + 8
    scratch_lanes = max(W, Wo1) * Cin

    kernel = functools.partial(
        _sepconv_kernel, K=K, padding=padding, N=N, H=H, W=W, Cin=Cin,
        Cout=Cout, Ho1=Ho1, Wo1=Wo1, Ho2=Ho2, Wo2=Wo2)

    vmem = pl.BlockSpec(memory_space=pltpu.MemorySpace.VMEM)
    out2d = pl.pallas_call(
        kernel,
        out_shape=jax.ShapeDtypeStruct((N * Ho2, Wo2 * Cout), jnp.float32),
        in_specs=[vmem] * 11,
        out_specs=vmem,
        scratch_shapes=[pltpu.VMEM((N, scratch_rows, scratch_lanes), jnp.float32)],
    )(x_packed, wb1, params["g1"], params["b1"], Gm1, T1,
      wb2, params["g2"], params["b2"], Gm2, T2)

    # Unpack the lane-dense output slab back to NCHW (layout plumbing only).
    out = out2d.reshape(N, Ho2, Wo2, Cout)
    return jnp.transpose(out, (0, 3, 1, 2))


def _sep_conv_reference(x_nchw, params, *, kernel_size, stride, padding):
    """Plain-JAX reference matching the PyTorch SepConv forward (train-mode BN)."""
    assert stride == 1
    x = jnp.transpose(x_nchw, (0, 2, 3, 1))
    dn = ("NHWC", "HWIO", "NHWC")

    def dilconv(x, dw, pw, gamma, beta):
        Ci = x.shape[-1]
        y = jnp.maximum(x, 0.0)
        y = jax.lax.conv_general_dilated(
            y, dw[:, :, None, :], (1, 1), [(padding, padding)] * 2,
            dimension_numbers=dn, feature_group_count=Ci)
        y = jax.lax.conv_general_dilated(
            y, pw[None, None, :, :], (1, 1), "VALID", dimension_numbers=dn)
        mean = jnp.mean(y, axis=(0, 1, 2), keepdims=True)
        var = jnp.mean((y - mean) ** 2, axis=(0, 1, 2), keepdims=True)
        y = (y - mean) * jax.lax.rsqrt(var + _BN_EPS)
        return y * gamma.reshape(1, 1, 1, -1) + beta.reshape(1, 1, 1, -1)

    y = dilconv(x, params["dw1"], params["pw1"], params["g1"], params["b1"])
    y = dilconv(y, params["dw2"], params["pw2"], params["g2"], params["b2"])
    return jnp.transpose(y, (0, 3, 1, 2))


if __name__ == "__main__":
    # SepConv(C_in=4, C_out=8, kernel_size=3, stride=1, padding=1)
    C_in, C_out, K, stride, padding = 4, 8, 3, 1, 1
    N, H, W = 2, 16, 16

    key = jax.random.PRNGKey(0)
    kx, kp = jax.random.split(key)
    x = jax.random.normal(kx, (N, C_in, H, W), jnp.float32)
    params = init_sepconv_params(kp, C_in, C_out, K)

    fn = jax.jit(functools.partial(sep_conv, kernel_size=K, stride=stride,
                                   padding=padding))
    out = fn(x, params)
    jax.block_until_ready(out)

    assert out.shape == (N, C_out, H, W), out.shape
    assert bool(jnp.all(jnp.isfinite(out)))

    ref = _sep_conv_reference(x, params, kernel_size=K, stride=stride,
                              padding=padding)
    err = float(jnp.max(jnp.abs(out - ref)))
    assert err < 2e-3, f"max abs error vs reference: {err}"

    print("KERNEL_OK")
</pallas_src>

<mosaic_0001>
module attributes {stable_mosaic.version = 11 : i64} {
  func.func @_sepconv_kernel(%arg0: memref<2x16x64xf32, #tpu.memory_space<vmem>>, %arg1: memref<3x64x64xf32, #tpu.memory_space<vmem>>, %arg2: memref<1x4xf32, #tpu.memory_space<vmem>>, %arg3: memref<1x4xf32, #tpu.memory_space<vmem>>, %arg4: memref<64x4xf32, #tpu.memory_space<vmem>>, %arg5: memref<4x64xf32, #tpu.memory_space<vmem>>, %arg6: memref<3x64x128xf32, #tpu.memory_space<vmem>>, %arg7: memref<1x8xf32, #tpu.memory_space<vmem>>, %arg8: memref<1x8xf32, #tpu.memory_space<vmem>>, %arg9: memref<128x8xf32, #tpu.memory_space<vmem>>, %arg10: memref<8x128xf32, #tpu.memory_space<vmem>>, %arg11: memref<32x128xf32, #tpu.memory_space<vmem>>, %arg12: memref<2x32x64xf32, #tpu.memory_space<vmem>>) attributes {dimension_semantics = [], scalar_prefetch = 0 : i64, scratch_operands = 1 : i64, tpu.core_type = #tpu.core_type<tc>} {
    %cst = arith.constant 0.000000e+00 : f32
    %0 = vector.broadcast %cst : f32 to vector<2x32x64xf32>
    %c0 = arith.constant 0 : index
    %c0_0 = arith.constant 0 : index
    %c0_1 = arith.constant 0 : index
    %1 = vector.load %arg12[%c0, %c0_0, %c0_1] : memref<2x32x64xf32, #tpu.memory_space<vmem>>, vector<2x32x64xf32>
    tpu.vector_store %arg12[%c0, %c0_0, %c0_1], %0 {strides = array<i32>} : memref<2x32x64xf32, #tpu.memory_space<vmem>>, vector<2x32x64xf32>,
    %c0_2 = arith.constant 0 : index
    %c0_3 = arith.constant 0 : index
    %c0_4 = arith.constant 0 : index
    %2 = vector.load %arg0[%c0_2, %c0_3, %c0_4] : memref<2x16x64xf32, #tpu.memory_space<vmem>>, vector<2x16x64xf32>
    %cst_5 = arith.constant 0.000000e+00 : f32
    %3 = vector.broadcast %cst_5 : f32 to vector<2x16x64xf32>
    %4 = arith.maximumf %2, %3 : vector<2x16x64xf32>
    %c0_6 = arith.constant 0 : index
    %c8 = arith.constant 8 : index
    %c0_7 = arith.constant 0 : index
    %5 = vector.load %arg12[%c0_6, %c8, %c0_7] : memref<2x32x64xf32, #tpu.memory_space<vmem>>, vector<2x16x64xf32>
    tpu.vector_store %arg12[%c0_6, %c8, %c0_7], %4 {strides = array<i32>} : memref<2x32x64xf32, #tpu.memory_space<vmem>>, vector<2x16x64xf32>,
    %cst_8 = arith.constant 0.000000e+00 : f32
    %6 = vector.broadcast %cst_8 : f32 to vector<32x64xf32>
    %c0_9 = arith.constant 0 : index
    %c7 = arith.constant 7 : index
    %c0_10 = arith.constant 0 : index
    %7 = vector.load %arg12[%c0_9, %c7, %c0_10] : memref<2x32x64xf32, #tpu.memory_space<vmem>>, vector<2x16x64xf32>
    %8 = vector.shape_cast %7 : vector<2x16x64xf32> to vector<32x64xf32>
    %c0_11 = arith.constant 0 : index
    %c0_12 = arith.constant 0 : index
    %c0_13 = arith.constant 0 : index
    %9 = vector.load %arg1[%c0_11, %c0_12, %c0_13] : memref<3x64x64xf32, #tpu.memory_space<vmem>>, vector<1x64x64xf32>
    %10 = vector.shape_cast %9 : vector<1x64x64xf32> to vector<64x64xf32>
    %cst_14 = arith.constant dense<0.000000e+00> : vector<32x64xf32>
    %11 = tpu.matmul %8, %10, %cst_14 {dimension_numbers = #tpu.dot_dimension_numbers<[1], [0], [0], [1], [0, 0, 1, 1], [], []>} : vector<32x64xf32>, vector<64x64xf32>, vector<32x64xf32> -> vector<32x64xf32>
    %12 = arith.addf %6, %11 : vector<32x64xf32>
    %c0_15 = arith.constant 0 : index
    %c8_16 = arith.constant 8 : index
    %c0_17 = arith.constant 0 : index
    %13 = vector.load %arg12[%c0_15, %c8_16, %c0_17] : memref<2x32x64xf32, #tpu.memory_space<vmem>>, vector<2x16x64xf32>
    %14 = vector.shape_cast %13 : vector<2x16x64xf32> to vector<32x64xf32>
    %c1 = arith.constant 1 : index
    %c0_18 = arith.constant 0 : index
    %c0_19 = arith.constant 0 : index
    %15 = vector.load %arg1[%c1, %c0_18, %c0_19] : memref<3x64x64xf32, #tpu.memory_space<vmem>>, vector<1x64x64xf32>
    %16 = vector.shape_cast %15 : vector<1x64x64xf32> to vector<64x64xf32>
    %cst_20 = arith.constant dense<0.000000e+00> : vector<32x64xf32>
    %17 = tpu.matmul %14, %16, %cst_20 {dimension_numbers = #tpu.dot_dimension_numbers<[1], [0], [0], [1], [0, 0, 1, 1], [], []>} : vector<32x64xf32>, vector<64x64xf32>, vector<32x64xf32> -> vector<32x64xf32>
    %18 = arith.addf %12, %17 : vector<32x64xf32>
    %c0_21 = arith.constant 0 : index
    %c9 = arith.constant 9 : index
    %c0_22 = arith.constant 0 : index
    %19 = vector.load %arg12[%c0_21, %c9, %c0_22] : memref<2x32x64xf32, #tpu.memory_space<vmem>>, vector<2x16x64xf32>
    %20 = vector.shape_cast %19 : vector<2x16x64xf32> to vector<32x64xf32>
    %c2 = arith.constant 2 : index
    %c0_23 = arith.constant 0 : index
    %c0_24 = arith.constant 0 : index
    %21 = vector.load %arg1[%c2, %c0_23, %c0_24] : memref<3x64x64xf32, #tpu.memory_space<vmem>>, vector<1x64x64xf32>
    %22 = vector.shape_cast %21 : vector<1x64x64xf32> to vector<64x64xf32>
    %cst_25 = arith.constant dense<0.000000e+00> : vector<32x64xf32>
    %23 = tpu.matmul %20, %22, %cst_25 {dimension_numbers = #tpu.dot_dimension_numbers<[1], [0], [0], [1], [0, 0, 1, 1], [], []>} : vector<32x64xf32>, vector<64x64xf32>, vector<32x64xf32> -> vector<32x64xf32>
    %24 = arith.addf %18, %23 : vector<32x64xf32>
    %c0_26 = arith.constant 0 : index
    %c0_27 = arith.constant 0 : index
    %25 = vector.load %arg4[%c0_26, %c0_27] : memref<64x4xf32, #tpu.memory_space<vmem>>, vector<64x4xf32>
    %c0_28 = arith.constant 0 : index
    %c0_29 = arith.constant 0 : index
    %26 = vector.load %arg5[%c0_28, %c0_29] : memref<4x64xf32, #tpu.memory_space<vmem>>, vector<4x64xf32>
    %cst_30 = arith.constant dense<0.000000e+00> : vector<64xf32>
    %27 = vector.multi_reduction <add>, %24, %cst_30 [0] : vector<32x64xf32> to vector<64xf32>
    %28 = vector.shape_cast %27 : vector<64xf32> to vector<1x64xf32>
    %cst_31 = arith.constant dense<0.000000e+00> : vector<1x4xf32>
    %29 = tpu.matmul %28, %25, %cst_31 {dimension_numbers = #tpu.dot_dimension_numbers<[1], [0], [0], [1], [0, 0, 1, 1], [], []>} : vector<1x64xf32>, vector<64x4xf32>, vector<1x4xf32> -> vector<1x4xf32>
    %cst_32 = arith.constant dense<0.000000e+00> : vector<1x64xf32>
    %30 = tpu.matmul %29, %26, %cst_32 {dimension_numbers = #tpu.dot_dimension_numbers<[1], [0], [0], [1], [0, 0, 1, 1], [], []>} : vector<1x4xf32>, vector<4x64xf32>, vector<1x64xf32> -> vector<1x64xf32>
    %31 = vector.broadcast %30 : vector<1x64xf32> to vector<32x64xf32>
    %32 = arith.subf %24, %31 : vector<32x64xf32>
    %33 = arith.mulf %32, %32 : vector<32x64xf32>
    %cst_33 = arith.constant dense<0.000000e+00> : vector<64xf32>
    %34 = vector.multi_reduction <add>, %33, %cst_33 [0] : vector<32x64xf32> to vector<64xf32>
    %35 = vector.shape_cast %34 : vector<64xf32> to vector<1x64xf32>
    %cst_34 = arith.constant dense<0.000000e+00> : vector<1x4xf32>
    %36 = tpu.matmul %35, %25, %cst_34 {dimension_numbers = #tpu.dot_dimension_numbers<[1], [0], [0], [1], [0, 0, 1, 1], [], []>} : vector<1x64xf32>, vector<64x4xf32>, vector<1x4xf32> -> vector<1x4xf32>
    %c0_35 = arith.constant 0 : index
    %c0_36 = arith.constant 0 : index
    %37 = vector.load %arg2[%c0_35, %c0_36] : memref<1x4xf32, #tpu.memory_space<vmem>>, vector<1x4xf32>
    %cst_37 = arith.constant 9.99999974E-6 : f32
    %38 = vector.broadcast %cst_37 : f32 to vector<1x4xf32>
    %39 = arith.addf %36, %38 : vector<1x4xf32>
    %40 = math.rsqrt %39 : vector<1x4xf32>
    %41 = arith.mulf %37, %40 : vector<1x4xf32>
    %cst_38 = arith.constant dense<0.000000e+00> : vector<1x64xf32>
    %42 = tpu.matmul %41, %26, %cst_38 {dimension_numbers = #tpu.dot_dimension_numbers<[1], [0], [0], [1], [0, 0, 1, 1], [], []>} : vector<1x4xf32>, vector<4x64xf32>, vector<1x64xf32> -> vector<1x64xf32>
    %c0_39 = arith.constant 0 : index
    %c0_40 = arith.constant 0 : index
    %43 = vector.load %arg3[%c0_39, %c0_40] : memref<1x4xf32, #tpu.memory_space<vmem>>, vector<1x4xf32>
    %cst_41 = arith.constant dense<0.000000e+00> : vector<1x64xf32>
    %44 = tpu.matmul %43, %26, %cst_41 {dimension_numbers = #tpu.dot_dimension_numbers<[1], [0], [0], [1], [0, 0, 1, 1], [], []>} : vector<1x4xf32>, vector<4x64xf32>, vector<1x64xf32> -> vector<1x64xf32>
    %45 = vector.broadcast %42 : vector<1x64xf32> to vector<32x64xf32>
    %46 = arith.mulf %32, %45 : vector<32x64xf32>
    %47 = vector.broadcast %44 : vector<1x64xf32> to vector<32x64xf32>
    %48 = arith.addf %46, %47 : vector<32x64xf32>
    %49 = vector.shape_cast %48 : vector<32x64xf32> to vector<2x16x64xf32>
    %cst_42 = arith.constant 0.000000e+00 : f32
    %50 = vector.broadcast %cst_42 : f32 to vector<2x16x64xf32>
    %51 = arith.maximumf %49, %50 : vector<2x16x64xf32>
    %c0_43 = arith.constant 0 : index
    %c8_44 = arith.constant 8 : index
    %c0_45 = arith.constant 0 : index
    %52 = vector.load %arg12[%c0_43, %c8_44, %c0_45] : memref<2x32x64xf32, #tpu.memory_space<vmem>>, vector<2x16x64xf32>
    tpu.vector_store %arg12[%c0_43, %c8_44, %c0_45], %51 {strides = array<i32>} : memref<2x32x64xf32, #tpu.memory_space<vmem>>, vector<2x16x64xf32>,
    %cst_46 = arith.constant 0.000000e+00 : f32
    %53 = vector.broadcast %cst_46 : f32 to vector<32x128xf32>
    %c0_47 = arith.constant 0 : index
    %c7_48 = arith.constant 7 : index
    %c0_49 = arith.constant 0 : index
    %54 = vector.load %arg12[%c0_47, %c7_48, %c0_49] : memref<2x32x64xf32, #tpu.memory_space<vmem>>, vector<2x16x64xf32>
    %55 = vector.shape_cast %54 : vector<2x16x64xf32> to vector<32x64xf32>
    %c0_50 = arith.constant 0 : index
    %c0_51 = arith.constant 0 : index
    %c0_52 = arith.constant 0 : index
    %56 = vector.load %arg6[%c0_50, %c0_51, %c0_52] : memref<3x64x128xf32, #tpu.memory_space<vmem>>, vector<1x64x128xf32>
    %57 = vector.shape_cast %56 : vector<1x64x128xf32> to vector<64x128xf32>
    %cst_53 = arith.constant dense<0.000000e+00> : vector<32x128xf32>
    %58 = tpu.matmul %55, %57, %cst_53 {dimension_numbers = #tpu.dot_dimension_numbers<[1], [0], [0], [1], [0, 0, 1, 1], [], []>} : vector<32x64xf32>, vector<64x128xf32>, vector<32x128xf32> -> vector<32x128xf32>
    %59 = arith.addf %53, %58 : vector<32x128xf32>
    %c0_54 = arith.constant 0 : index
    %c8_55 = arith.constant 8 : index
    %c0_56 = arith.constant 0 : index
    %60 = vector.load %arg12[%c0_54, %c8_55, %c0_56] : memref<2x32x64xf32, #tpu.memory_space<vmem>>, vector<2x16x64xf32>
    %61 = vector.shape_cast %60 : vector<2x16x64xf32> to vector<32x64xf32>
    %c1_57 = arith.constant 1 : index
    %c0_58 = arith.constant 0 : index
    %c0_59 = arith.constant 0 : index
    %62 = vector.load %arg6[%c1_57, %c0_58, %c0_59] : memref<3x64x128xf32, #tpu.memory_space<vmem>>, vector<1x64x128xf32>
    %63 = vector.shape_cast %62 : vector<1x64x128xf32> to vector<64x128xf32>
    %cst_60 = arith.constant dense<0.000000e+00> : vector<32x128xf32>
    %64 = tpu.matmul %61, %63, %cst_60 {dimension_numbers = #tpu.dot_dimension_numbers<[1], [0], [0], [1], [0, 0, 1, 1], [], []>} : vector<32x64xf32>, vector<64x128xf32>, vector<32x128xf32> -> vector<32x128xf32>
    %65 = arith.addf %59, %64 : vector<32x128xf32>
    %c0_61 = arith.constant 0 : index
    %c9_62 = arith.constant 9 : index
    %c0_63 = arith.constant 0 : index
    %66 = vector.load %arg12[%c0_61, %c9_62, %c0_63] : memref<2x32x64xf32, #tpu.memory_space<vmem>>, vector<2x16x64xf32>
    %67 = vector.shape_cast %66 : vector<2x16x64xf32> to vector<32x64xf32>
    %c2_64 = arith.constant 2 : index
    %c0_65 = arith.constant 0 : index
    %c0_66 = arith.constant 0 : index
    %68 = vector.load %arg6[%c2_64, %c0_65, %c0_66] : memref<3x64x128xf32, #tpu.memory_space<vmem>>, vector<1x64x128xf32>
    %69 = vector.shape_cast %68 : vector<1x64x128xf32> to vector<64x128xf32>
    %cst_67 = arith.constant dense<0.000000e+00> : vector<32x128xf32>
    %70 = tpu.matmul %67, %69, %cst_67 {dimension_numbers = #tpu.dot_dimension_numbers<[1], [0], [0], [1], [0, 0, 1, 1], [], []>} : vector<32x64xf32>, vector<64x128xf32>, vector<32x128xf32> -> vector<32x128xf32>
    %71 = arith.addf %65, %70 : vector<32x128xf32>
    %c0_68 = arith.constant 0 : index
    %c0_69 = arith.constant 0 : index
    %72 = vector.load %arg9[%c0_68, %c0_69] : memref<128x8xf32, #tpu.memory_space<vmem>>, vector<128x8xf32>
    %c0_70 = arith.constant 0 : index
    %c0_71 = arith.constant 0 : index
    %73 = vector.load %arg10[%c0_70, %c0_71] : memref<8x128xf32, #tpu.memory_space<vmem>>, vector<8x128xf32>
    %cst_72 = arith.constant dense<0.000000e+00> : vector<128xf32>
    %74 = vector.multi_reduction <add>, %71, %cst_72 [0] : vector<32x128xf32> to vector<128xf32>
    %75 = vector.shape_cast %74 : vector<128xf32> to vector<1x128xf32>
    %cst_73 = arith.constant dense<0.000000e+00> : vector<1x8xf32>
    %76 = tpu.matmul %75, %72, %cst_73 {dimension_numbers = #tpu.dot_dimension_numbers<[1], [0], [0], [1], [0, 0, 1, 1], [], []>} : vector<1x128xf32>, vector<128x8xf32>, vector<1x8xf32> -> vector<1x8xf32>
    %cst_74 = arith.constant dense<0.000000e+00> : vector<1x128xf32>
    %77 = tpu.matmul %76, %73, %cst_74 {dimension_numbers = #tpu.dot_dimension_numbers<[1], [0], [0], [1], [0, 0, 1, 1], [], []>} : vector<1x8xf32>, vector<8x128xf32>, vector<1x128xf32> -> vector<1x128xf32>
    %78 = vector.broadcast %77 : vector<1x128xf32> to vector<32x128xf32>
    %79 = arith.subf %71, %78 : vector<32x128xf32>
    %80 = arith.mulf %79, %79 : vector<32x128xf32>
    %cst_75 = arith.constant dense<0.000000e+00> : vector<128xf32>
    %81 = vector.multi_reduction <add>, %80, %cst_75 [0] : vector<32x128xf32> to vector<128xf32>
    %82 = vector.shape_cast %81 : vector<128xf32> to vector<1x128xf32>
    %cst_76 = arith.constant dense<0.000000e+00> : vector<1x8xf32>
    %83 = tpu.matmul %82, %72, %cst_76 {dimension_numbers = #tpu.dot_dimension_numbers<[1], [0], [0], [1], [0, 0, 1, 1], [], []>} : vector<1x128xf32>, vector<128x8xf32>, vector<1x8xf32> -> vector<1x8xf32>
    %c0_77 = arith.constant 0 : index
    %c0_78 = arith.constant 0 : index
    %84 = vector.load %arg7[%c0_77, %c0_78] : memref<1x8xf32, #tpu.memory_space<vmem>>, vector<1x8xf32>
    %cst_79 = arith.constant 9.99999974E-6 : f32
    %85 = vector.broadcast %cst_79 : f32 to vector<1x8xf32>
    %86 = arith.addf %83, %85 : vector<1x8xf32>
    %87 = math.rsqrt %86 : vector<1x8xf32>
    %88 = arith.mulf %84, %87 : vector<1x8xf32>
    %cst_80 = arith.constant dense<0.000000e+00> : vector<1x128xf32>
    %89 = tpu.matmul %88, %73, %cst_80 {dimension_numbers = #tpu.dot_dimension_numbers<[1], [0], [0], [1], [0, 0, 1, 1], [], []>} : vector<1x8xf32>, vector<8x128xf32>, vector<1x128xf32> -> vector<1x128xf32>
    %c0_81 = arith.constant 0 : index
    %c0_82 = arith.constant 0 : index
    %90 = vector.load %arg8[%c0_81, %c0_82] : memref<1x8xf32, #tpu.memory_space<vmem>>, vector<1x8xf32>
    %cst_83 = arith.constant dense<0.000000e+00> : vector<1x128xf32>
    %91 = tpu.matmul %90, %73, %cst_83 {dimension_numbers = #tpu.dot_dimension_numbers<[1], [0], [0], [1], [0, 0, 1, 1], [], []>} : vector<1x8xf32>, vector<8x128xf32>, vector<1x128xf32> -> vector<1x128xf32>
    %92 = vector.broadcast %89 : vector<1x128xf32> to vector<32x128xf32>
    %93 = arith.mulf %79, %92 : vector<32x128xf32>
    %94 = vector.broadcast %91 : vector<1x128xf32> to vector<32x128xf32>
    %95 = arith.addf %93, %94 : vector<32x128xf32>
    %c0_84 = arith.constant 0 : index
    %c0_85 = arith.constant 0 : index
    %96 = vector.load %arg11[%c0_84, %c0_85] : memref<32x128xf32, #tpu.memory_space<vmem>>, vector<32x128xf32>
    tpu.vector_store %arg11[%c0_84, %c0_85], %95 {strides = array<i32>} : memref<32x128xf32, #tpu.memory_space<vmem>>, vector<32x128xf32>,
    return
  }
}

</mosaic_0001>

<llo_original>
// kernel: tile.19
$region0: #{tile.19}
  %s0 = inlined_call_operand.vmem [shape: f32[16,8,8], index: 0, kind: input, shape index: {}]
  %s1 = inlined_call_operand.vmem [shape: f32[128,8], index: 1, kind: output, shape index: {}]
  %s2 = smov 3
  %v3 = vld [vmem:[%s0] ss:$16 sm:%s2]
  %s4 = smov 12
  %v5 = vld [vmem:[%s0] ss:$16 sm:%s4]
  %vm6 = vcmask 1043458
  %v7 = vsel %vm6, %v5, %v3
  %s8 = smov 48
  %v9 = vld [vmem:[%s0] ss:$16 sm:%s8]
  %vm10 = vcmask 1045508
  %v11 = vsel %vm10, %v9, %v7
  %s12 = smov 192
  %v13 = vld [vmem:[%s0] ss:$16 sm:%s12]
  %vm14 = vcmask 1047558
  %v15 = vsel %vm14, %v13, %v11
  %vm16 = vcmask 64512
  %17 = vst.msk [vmem:[%s1] sm:$0xff] %vm16, %v15
  %s18 = scalar_lea.vmem %s0, 15
  %s19 = smov 3
  %v20 = vld [vmem:[%s18] ss:$16 sm:%s19]
  %s21 = scalar_lea.vmem %s0, 15
  %s22 = smov 12
  %v23 = vld [vmem:[%s21] ss:$16 sm:%s22]
  %vm24 = vcmask 1043458
  %v25 = vsel %vm24, %v23, %v20
  %s26 = scalar_lea.vmem %s0, 15
  %s27 = smov 48
  %v28 = vld [vmem:[%s26] ss:$16 sm:%s27]
  %vm29 = vcmask 1045508
  %v30 = vsel %vm29, %v28, %v25
  %s31 = scalar_lea.vmem %s0, 15
  %s32 = smov 192
  %v33 = vld [vmem:[%s31] ss:$16 sm:%s32]
  %vm34 = vcmask 1047558
  %v35 = vsel %vm34, %v33, %v30
  %36 = vrot.lane.b32.xlu0 %v35, 120
  %v37 = vpop.permute.xlu0 %36
  %vm38 = vcmask 1048512
  %39 = vst.msk [vmem:[%s1] sm:$0xff] %vm38, %v37
  %s40 = scalar_lea.vmem %s0, 14
  %s41 = smov 3
  %v42 = vld [vmem:[%s40] ss:$16 sm:%s41]
  %s43 = scalar_lea.vmem %s0, 14
  %s44 = smov 12
  %v45 = vld [vmem:[%s43] ss:$16 sm:%s44]
  %vm46 = vcmask 1043458
  %v47 = vsel %vm46, %v45, %v42
  %s48 = scalar_lea.vmem %s0, 14
  %s49 = smov 48
  %v50 = vld [vmem:[%s48] ss:$16 sm:%s49]
  %vm51 = vcmask 1045508
  %v52 = vsel %vm51, %v50, %v47
  %s53 = scalar_lea.vmem %s0, 14
  %s54 = smov 192
  %v55 = vld [vmem:[%s53] ss:$16 sm:%s54]
  %vm56 = vcmask 1047558
  %v57 = vsel %vm56, %v55, %v52
  %58 = vrot.lane.b32.xlu0 %v57, 112
  %v59 = vpop.permute.xlu0 %58
  %vm60 = vcmask 982912
  %61 = vst.msk [vmem:[%s1] sm:$0xff] %vm60, %v59
  %s62 = scalar_lea.vmem %s0, 13
  %s63 = smov 3
  %v64 = vld [vmem:[%s62] ss:$16 sm:%s63]
  %s65 = scalar_lea.vmem %s0, 13
  %s66 = smov 12
  %v67 = vld [vmem:[%s65] ss:$16 sm:%s66]
  %vm68 = vcmask 1043458
  %v69 = vsel %vm68, %v67, %v64
  %s70 = scalar_lea.vmem %s0, 13
  %s71 = smov 48
  %v72 = vld [vmem:[%s70] ss:$16 sm:%s71]
  %vm73 = vcmask 1045508
  %v74 = vsel %vm73, %v72, %v69
  %s75 = scalar_lea.vmem %s0, 13
  %s76 = smov 192
  %v77 = vld [vmem:[%s75] ss:$16 sm:%s76]
  %vm78 = vcmask 1047558
  %v79 = vsel %vm78, %v77, %v74
  %80 = vrot.lane.b32.xlu0 %v79, 104
  %v81 = vpop.permute.xlu0 %80
  %vm82 = vcmask 917312
  %83 = vst.msk [vmem:[%s1] sm:$0xff] %vm82, %v81
  %s84 = scalar_lea.vmem %s0, 12
  %s85 = smov 3
  %v86 = vld [vmem:[%s84] ss:$16 sm:%s85]
  %s87 = scalar_lea.vmem %s0, 12
  %s88 = smov 12
  %v89 = vld [vmem:[%s87] ss:$16 sm:%s88]
  %vm90 = vcmask 1043458
  %v91 = vsel %vm90, %v89, %v86
  %s92 = scalar_lea.vmem %s0, 12
  %s93 = smov 48
  %v94 = vld [vmem:[%s92] ss:$16 sm:%s93]
  %vm95 = vcmask 1045508
  %v96 = vsel %vm95, %v94, %v91
  %s97 = scalar_lea.vmem %s0, 12
  %s98 = smov 192
  %v99 = vld [vmem:[%s97] ss:$16 sm:%s98]
  %vm100 = vcmask 1047558
  %v101 = vsel %vm100, %v99, %v96
  %102 = vrot.lane.b32.xlu0 %v101, 96
  %v103 = vpop.permute.xlu0 %102
  %vm104 = vcmask 851712
  %105 = vst.msk [vmem:[%s1] sm:$0xff] %vm104, %v103
  %s106 = scalar_lea.vmem %s0, 11
  %s107 = smov 3
  %v108 = vld [vmem:[%s106] ss:$16 sm:%s107]
  %s109 = scalar_lea.vmem %s0, 11
  %s110 = smov 12
  %v111 = vld [vmem:[%s109] ss:$16 sm:%s110]
  %vm112 = vcmask 1043458
  %v113 = vsel %vm112, %v111, %v108
  %s114 = scalar_lea.vmem %s0, 11
  %s115 = smov 48
  %v116 = vld [vmem:[%s114] ss:$16 sm:%s115]
  %vm117 = vcmask 1045508
  %v118 = vsel %vm117, %v116, %v113
  %s119 = scalar_lea.vmem %s0, 11
  %s120 = smov 192
  %v121 = vld [vmem:[%s119] ss:$16 sm:%s120]
  %vm122 = vcmask 1047558
  %v123 = vsel %vm122, %v121, %v118
  %124 = vrot.lane.b32.xlu0 %v123, 88
  %v125 = vpop.permute.xlu0 %124
  %vm126 = vcmask 786112
  %127 = vst.msk [vmem:[%s1] sm:$0xff] %vm126, %v125
  %s128 = scalar_lea.vmem %s0, 10
  %s129 = smov 3
  %v130 = vld [vmem:[%s128] ss:$16 sm:%s129]
  %s131 = scalar_lea.vmem %s0, 10
  %s132 = smov 12
  %v133 = vld [vmem:[%s131] ss:$16 sm:%s132]
  %vm134 = vcmask 1043458
  %v135 = vsel %vm134, %v133, %v130
  %s136 = scalar_lea.vmem %s0, 10
  %s137 = smov 48
  %v138 = vld [vmem:[%s136] ss:$16 sm:%s137]
  %vm139 = vcmask 1045508
  %v140 = vsel %vm139, %v138, %v135
  %s141 = scalar_lea.vmem %s0, 10
  %s142 = smov 192
  %v143 = vld [vmem:[%s141] ss:$16 sm:%s142]
  %vm144 = vcmask 1047558
  %v145 = vsel %vm144, %v143, %v140
  %146 = vrot.lane.b32.xlu0 %v145, 80
  %v147 = vpop.permute.xlu0 %146
  %vm148 = vcmask 720512
  %149 = vst.msk [vmem:[%s1] sm:$0xff] %vm148, %v147
  %s150 = scalar_lea.vmem %s0, 9
  %s151 = smov 3
  %v152 = vld [vmem:[%s150] ss:$16 sm:%s151]
  %s153 = scalar_lea.vmem %s0, 9
  %s154 = smov 12
  %v155 = vld [vmem:[%s153] ss:$16 sm:%s154]
  %vm156 = vcmask 1043458
  %v157 = vsel %vm156, %v155, %v152
  %s158 = scalar_lea.vmem %s0, 9
  %s159 = smov 48
  %v160 = vld [vmem:[%s158] ss:$16 sm:%s159]
  %vm161 = vcmask 1045508
  %v162 = vsel %vm161, %v160, %v157
  %s163 = scalar_lea.vmem %s0, 9
  %s164 = smov 192
  %v165 = vld [vmem:[%s163] ss:$16 sm:%s164]
  %vm166 = vcmask 1047558
  %v167 = vsel %vm166, %v165, %v162
  %168 = vrot.lane.b32.xlu0 %v167, 72
  %v169 = vpop.permute.xlu0 %168
  %vm170 = vcmask 654912
  %171 = vst.msk [vmem:[%s1] sm:$0xff] %vm170, %v169
  %s172 = scalar_lea.vmem %s0, 8
  %s173 = smov 3
  %v174 = vld [vmem:[%s172] ss:$16 sm:%s173]
  %s175 = scalar_lea.vmem %s0, 8
  %s176 = smov 12
  %v177 = vld [vmem:[%s175] ss:$16 sm:%s176]
  %vm178 = vcmask 1043458
  %v179 = vsel %vm178, %v177, %v174
  %s180 = scalar_lea.vmem %s0, 8
  %s181 = smov 48
  %v182 = vld [vmem:[%s180] ss:$16 sm:%s181]
  %vm183 = vcmask 1045508
  %v184 = vsel %vm183, %v182, %v179
  %s185 = scalar_lea.vmem %s0, 8
  %s186 = smov 192
  %v187 = vld [vmem:[%s185] ss:$16 sm:%s186]
  %vm188 = vcmask 1047558
  %v189 = vsel %vm188, %v187, %v184
  %190 = vrot.lane.b32.xlu0 %v189, 64
  %v191 = vpop.permute.xlu0 %190
  %vm192 = vcmask 589312
  %193 = vst.msk [vmem:[%s1] sm:$0xff] %vm192, %v191
  %s194 = scalar_lea.vmem %s0, 7
  %s195 = smov 3
  %v196 = vld [vmem:[%s194] ss:$16 sm:%s195]
  %s197 = scalar_lea.vmem %s0, 7
  %s198 = smov 12
  %v199 = vld [vmem:[%s197] ss:$16 sm:%s198]
  %vm200 = vcmask 1043458
  %v201 = vsel %vm200, %v199, %v196
  %s202 = scalar_lea.vmem %s0, 7
  %s203 = smov 48
  %v204 = vld [vmem:[%s202] ss:$16 sm:%s203]
  %vm205 = vcmask 1045508
  %v206 = vsel %vm205, %v204, %v201
  %s207 = scalar_lea.vmem %s0, 7
  %s208 = smov 192
  %v209 = vld [vmem:[%s207] ss:$16 sm:%s208]
  %vm210 = vcmask 1047558
  %v211 = vsel %vm210, %v209, %v206
  %212 = vrot.lane.b32.xlu0 %v211, 56
  %v213 = vpop.permute.xlu0 %212
  %vm214 = vcmask 523712
  %215 = vst.msk [vmem:[%s1] sm:$0xff] %vm214, %v213
  %s216 = scalar_lea.vmem %s0, 6
  %s217 = smov 3
  %v218 = vld [vmem:[%s216] ss:$16 sm:%s217]
  %s219 = scalar_lea.vmem %s0, 6
  %s220 = smov 12
  %v221 = vld [vmem:[%s219] ss:$16 sm:%s220]
  %vm222 = vcmask 1043458
  %v223 = vsel %vm222, %v221, %v218
  %s224 = scalar_lea.vmem %s0, 6
  %s225 = smov 48
  %v226 = vld [vmem:[%s224] ss:$16 sm:%s225]
  %vm227 = vcmask 1045508
  %v228 = vsel %vm227, %v226, %v223
  %s229 = scalar_lea.vmem %s0, 6
  %s230 = smov 192
  %v231 = vld [vmem:[%s229] ss:$16 sm:%s230]
  %vm232 = vcmask 1047558
  %v233 = vsel %vm232, %v231, %v228
  %234 = vrot.lane.b32.xlu0 %v233, 48
  %v235 = vpop.permute.xlu0 %234
  %vm236 = vcmask 458112
  %237 = vst.msk [vmem:[%s1] sm:$0xff] %vm236, %v235
  %s238 = scalar_lea.vmem %s0, 5
  %s239 = smov 3
  %v240 = vld [vmem:[%s238] ss:$16 sm:%s239]
  %s241 = scalar_lea.vmem %s0, 5
  %s242 = smov 12
  %v243 = vld [vmem:[%s241] ss:$16 sm:%s242]
  %vm244 = vcmask 1043458
  %v245 = vsel %vm244, %v243, %v240
  %s246 = scalar_lea.vmem %s0, 5
  %s247 = smov 48
  %v248 = vld [vmem:[%s246] ss:$16 sm:%s247]
  %vm249 = vcmask 1045508
  %v250 = vsel %vm249, %v248, %v245
  %s251 = scalar_lea.vmem %s0, 5
  %s252 = smov 192
  %v253 = vld [vmem:[%s251] ss:$16 sm:%s252]
  %vm254 = vcmask 1047558
  %v255 = vsel %vm254, %v253, %v250
  %256 = vrot.lane.b32.xlu0 %v255, 40
  %v257 = vpop.permute.xlu0 %256
  %vm258 = vcmask 392512
  %259 = vst.msk [vmem:[%s1] sm:$0xff] %vm258, %v257
  %s260 = scalar_lea.vmem %s0, 4
  %s261 = smov 3
  %v262 = vld [vmem:[%s260] ss:$16 sm:%s261]
  %s263 = scalar_lea.vmem %s0, 4
  %s264 = smov 12
  %v265 = vld [vmem:[%s263] ss:$16 sm:%s264]
  %vm266 = vcmask 1043458
  %v267 = vsel %vm266, %v265, %v262
  %s268 = scalar_lea.vmem %s0, 4
  %s269 = smov 48
  %v270 = vld [vmem:[%s268] ss:$16 sm:%s269]
  %vm271 = vcmask 1045508
  %v272 = vsel %vm271, %v270, %v267
  %s273 = scalar_lea.vmem %s0, 4
  %s274 = smov 192
  %v275 = vld [vmem:[%s273] ss:$16 sm:%s274]
  %vm276 = vcmask 1047558
  %v277 = vsel %vm276, %v275, %v272
  %278 = vrot.lane.b32.xlu0 %v277, 32
  %v279 = vpop.permute.xlu0 %278
  %vm280 = vcmask 326912
  %281 = vst.msk [vmem:[%s1] sm:$0xff] %vm280, %v279
  %s282 = scalar_lea.vmem %s0, 3
  %s283 = smov 3
  %v284 = vld [vmem:[%s282] ss:$16 sm:%s283]
  %s285 = scalar_lea.vmem %s0, 3
  %s286 = smov 12
  %v287 = vld [vmem:[%s285] ss:$16 sm:%s286]
  %vm288 = vcmask 1043458
  %v289 = vsel %vm288, %v287, %v284
  %s290 = scalar_lea.vmem %s0, 3
  %s291 = smov 48
  %v292 = vld [vmem:[%s290] ss:$16 sm:%s291]
  %vm293 = vcmask 1045508
  %v294 = vsel %vm293, %v292, %v289
  %s295 = scalar_lea.vmem %s0, 3
  %s296 = smov 192
  %v297 = vld [vmem:[%s295] ss:$16 sm:%s296]
  %vm298 = vcmask 1047558
  %v299 = vsel %vm298, %v297, %v294
  %300 = vrot.lane.b32.xlu0 %v299, 24
  %v301 = vpop.permute.xlu0 %300
  %vm302 = vcmask 261312
  %303 = vst.msk [vmem:[%s1] sm:$0xff] %vm302, %v301
  %s304 = scalar_lea.vmem %s0, 2
  %s305 = smov 3
  %v306 = vld [vmem:[%s304] ss:$16 sm:%s305]
  %s307 = scalar_lea.vmem %s0, 2
  %s308 = smov 12
  %v309 = vld [vmem:[%s307] ss:$16 sm:%s308]
  %vm310 = vcmask 1043458
  %v311 = vsel %vm310, %v309, %v306
  %s312 = scalar_lea.vmem %s0, 2
  %s313 = smov 48
  %v314 = vld [vmem:[%s312] ss:$16 sm:%s313]
  %vm315 = vcmask 1045508
  %v316 = vsel %vm315, %v314, %v311
  %s317 = scalar_lea.vmem %s0, 2
  %s318 = smov 192
  %v319 = vld [vmem:[%s317] ss:$16 sm:%s318]
  %vm320 = vcmask 1047558
  %v321 = vsel %vm320, %v319, %v316
  %322 = vrot.lane.b32.xlu0 %v321, 16
  %v323 = vpop.permute.xlu0 %322
  %vm324 = vcmask 195712
  %325 = vst.msk [vmem:[%s1] sm:$0xff] %vm324, %v323
  %s326 = scalar_lea.vmem %s0, 1
  %s327 = smov 3
  %v328 = vld [vmem:[%s326] ss:$16 sm:%s327]
  %s329 = scalar_lea.vmem %s0, 1
  %s330 = smov 12
  %v331 = vld [vmem:[%s329] ss:$16 sm:%s330]
  %vm332 = vcmask 1043458
  %v333 = vsel %vm332, %v331, %v328
  %s334 = scalar_lea.vmem %s0, 1
  %s335 = smov 48
  %v336 = vld [vmem:[%s334] ss:$16 sm:%s335]
  %vm337 = vcmask 1045508
  %v338 = vsel %vm337, %v336, %v333
  %s339 = scalar_lea.vmem %s0, 1
  %s340 = smov 192
  %v341 = vld [vmem:[%s339] ss:$16 sm:%s340]
  %vm342 = vcmask 1047558
  %v343 = vsel %vm342, %v341, %v338
  %344 = vrot.lane.b32.xlu0 %v343, 8
  %v345 = vpop.permute.xlu0 %344
  %vm346 = vcmask 130112
  %347 = vst.msk [vmem:[%s1] sm:$0xff] %vm346, %v345

// kernel: tile.14
$region0: #{tile.14}
  %s0 = inlined_call_operand.vmem [shape: f32[16,4,4], index: 0, kind: input, shape index: {}]
  %s1 = inlined_call_operand.vmem [shape: f32[64,4], index: 1, kind: output, shape index: {}]
  $region1: #{tile.14} parent=0
    #allocation0 [shape = 'u8[4096]{0}', space=vmem, size = 0x1000, scoped, tag = 'scoped mem for output reshape']
    %s2 = smov 3
    %v3 = vld [vmem:[%s0] ss:$16 sm:%s2]
    %s4 = smov 12
    %v5 = vld [vmem:[%s0] ss:$16 sm:%s4]
    %vm6 = vcmask 1043458
    %v7 = vsel %vm6, %v5, %v3
    %vm8 = vcmask 31744
    %9 = vst.msk [vmem:[#allocation0] sm:$0xf] %vm8, %v7
    %s10 = scalar_lea.vmem %s0, 15
    %s11 = smov 3
    %v12 = vld [vmem:[%s10] ss:$16 sm:%s11]
    %s13 = scalar_lea.vmem %s0, 15
    %s14 = smov 12
    %v15 = vld [vmem:[%s13] ss:$16 sm:%s14]
    %vm16 = vcmask 1043458
    %v17 = vsel %vm16, %v15, %v12
    %18 = vrot.lane.b32.xlu0 %v17, 60
    %v19 = vpop.permute.xlu0 %18
    %vm20 = vcmask 523744
    %21 = vst.msk [vmem:[#allocation0] sm:$0xf] %vm20, %v19
    %s22 = scalar_lea.vmem %s0, 14
    %s23 = smov 3
    %v24 = vld [vmem:[%s22] ss:$16 sm:%s23]
    %s25 = scalar_lea.vmem %s0, 14
    %s26 = smov 12
    %v27 = vld [vmem:[%s25] ss:$16 sm:%s26]
    %vm28 = vcmask 1043458
    %v29 = vsel %vm28, %v27, %v24
    %30 = vrot.lane.b32.xlu0 %v29, 56
    %v31 = vpop.permute.xlu0 %30
    %vm32 = vcmask 490944
    %33 = vst.msk [vmem:[#allocation0] sm:$0xf] %vm32, %v31
    %s34 = scalar_lea.vmem %s0, 13
    %s35 = smov 3
    %v36 = vld [vmem:[%s34] ss:$16 sm:%s35]
    %s37 = scalar_lea.vmem %s0, 13
    %s38 = smov 12
    %v39 = vld [vmem:[%s37] ss:$16 sm:%s38]
    %vm40 = vcmask 1043458
    %v41 = vsel %vm40, %v39, %v36
    %42 = vrot.lane.b32.xlu0 %v41, 52
    %v43 = vpop.permute.xlu0 %42
    %vm44 = vcmask 458144
    %45 = vst.msk [vmem:[#allocation0] sm:$0xf] %vm44, %v43
    %s46 = scalar_lea.vmem %s0, 12
    %s47 = smov 3
    %v48 = vld [vmem:[%s46] ss:$16 sm:%s47]
    %s49 = scalar_lea.vmem %s0, 12
    %s50 = smov 12
    %v51 = vld [vmem:[%s49] ss:$16 sm:%s50]
    %vm52 = vcmask 1043458
    %v53 = vsel %vm52, %v51, %v48
    %54 = vrot.lane.b32.xlu0 %v53, 48
    %v55 = vpop.permute.xlu0 %54
    %vm56 = vcmask 425344
    %57 = vst.msk [vmem:[#allocation0] sm:$0xf] %vm56, %v55
    %s58 = scalar_lea.vmem %s0, 11
    %s59 = smov 3
    %v60 = vld [vmem:[%s58] ss:$16 sm:%s59]
    %s61 = scalar_lea.vmem %s0, 11
    %s62 = smov 12
    %v63 = vld [vmem:[%s61] ss:$16 sm:%s62]
    %vm64 = vcmask 1043458
    %v65 = vsel %vm64, %v63, %v60
    %66 = vrot.lane.b32.xlu0 %v65, 44
    %v67 = vpop.permute.xlu0 %66
    %vm68 = vcmask 392544
    %69 = vst.msk [vmem:[#allocation0] sm:$0xf] %vm68, %v67
    %s70 = scalar_lea.vmem %s0, 10
    %s71 = smov 3
    %v72 = vld [vmem:[%s70] ss:$16 sm:%s71]
    %s73 = scalar_lea.vmem %s0, 10
    %s74 = smov 12
    %v75 = vld [vmem:[%s73] ss:$16 sm:%s74]
    %vm76 = vcmask 1043458
    %v77 = vsel %vm76, %v75, %v72
    %78 = vrot.lane.b32.xlu0 %v77, 40
    %v79 = vpop.permute.xlu0 %78
    %vm80 = vcmask 359744
    %81 = vst.msk [vmem:[#allocation0] sm:$0xf] %vm80, %v79
    %s82 = scalar_lea.vmem %s0, 9
    %s83 = smov 3
    %v84 = vld [vmem:[%s82] ss:$16 sm:%s83]
    %s85 = scalar_lea.vmem %s0, 9
    %s86 = smov 12
    %v87 = vld [vmem:[%s85] ss:$16 sm:%s86]
    %vm88 = vcmask 1043458
    %v89 = vsel %vm88, %v87, %v84
    %90 = vrot.lane.b32.xlu0 %v89, 36
    %v91 = vpop.permute.xlu0 %90
    %vm92 = vcmask 326944
    %93 = vst.msk [vmem:[#allocation0] sm:$0xf] %vm92, %v91
    %s94 = scalar_lea.vmem %s0, 8
    %s95 = smov 3
    %v96 = vld [vmem:[%s94] ss:$16 sm:%s95]
    %s97 = scalar_lea.vmem %s0, 8
    %s98 = smov 12
    %v99 = vld [vmem:[%s97] ss:$16 sm:%s98]
    %vm100 = vcmask 1043458
    %v101 = vsel %vm100, %v99, %v96
    %102 = vrot.lane.b32.xlu0 %v101, 32
    %v103 = vpop.permute.xlu0 %102
    %vm104 = vcmask 294144
    %105 = vst.msk [vmem:[#allocation0] sm:$0xf] %vm104, %v103
    %s106 = scalar_lea.vmem %s0, 7
    %s107 = smov 3
    %v108 = vld [vmem:[%s106] ss:$16 sm:%s107]
    %s109 = scalar_lea.vmem %s0, 7
    %s110 = smov 12
    %v111 = vld [vmem:[%s109] ss:$16 sm:%s110]
    %vm112 = vcmask 1043458
    %v113 = vsel %vm112, %v111, %v108
    %114 = vrot.lane.b32.xlu0 %v113, 28
    %v115 = vpop.permute.xlu0 %114
    %vm116 = vcmask 261344
    %117 = vst.msk [vmem:[#allocation0] sm:$0xf] %vm116, %v115
    %s118 = scalar_lea.vmem %s0, 6
    %s119 = smov 3
    %v120 = vld [vmem:[%s118] ss:$16 sm:%s119]
    %s121 = scalar_lea.vmem %s0, 6
    %s122 = smov 12
    %v123 = vld [vmem:[%s121] ss:$16 sm:%s122]
    %vm124 = vcmask 1043458
    %v125 = vsel %vm124, %v123, %v120
    %126 = vrot.lane.b32.xlu0 %v125, 24
    %v127 = vpop.permute.xlu0 %126
    %vm128 = vcmask 228544
    %129 = vst.msk [vmem:[#allocation0] sm:$0xf] %vm128, %v127
    %s130 = scalar_lea.vmem %s0, 5
    %s131 = smov 3
    %v132 = vld [vmem:[%s130] ss:$16 sm:%s131]
    %s133 = scalar_lea.vmem %s0, 5
    %s134 = smov 12
    %v135 = vld [vmem:[%s133] ss:$16 sm:%s134]
    %vm136 = vcmask 1043458
    %v137 = vsel %vm136, %v135, %v132
    %138 = vrot.lane.b32.xlu0 %v137, 20
    %v139 = vpop.permute.xlu0 %138
    %vm140 = vcmask 195744
    %141 = vst.msk [vmem:[#allocation0] sm:$0xf] %vm140, %v139
    %s142 = scalar_lea.vmem %s0, 4
    %s143 = smov 3
    %v144 = vld [vmem:[%s142] ss:$16 sm:%s143]
    %s145 = scalar_lea.vmem %s0, 4
    %s146 = smov 12
    %v147 = vld [vmem:[%s145] ss:$16 sm:%s146]
    %vm148 = vcmask 1043458
    %v149 = vsel %vm148, %v147, %v144
    %150 = vrot.lane.b32.xlu0 %v149, 16
    %v151 = vpop.permute.xlu0 %150
    %vm152 = vcmask 162944
    %153 = vst.msk [vmem:[#allocation0] sm:$0xf] %vm152, %v151
    %s154 = scalar_lea.vmem %s0, 3
    %s155 = smov 3
    %v156 = vld [vmem:[%s154] ss:$16 sm:%s155]
    %s157 = scalar_lea.vmem %s0, 3
    %s158 = smov 12
    %v159 = vld [vmem:[%s157] ss:$16 sm:%s158]
    %vm160 = vcmask 1043458
    %v161 = vsel %vm160, %v159, %v156
    %162 = vrot.lane.b32.xlu0 %v161, 12
    %v163 = vpop.permute.xlu0 %162
    %vm164 = vcmask 130144
    %165 = vst.msk [vmem:[#allocation0] sm:$0xf] %vm164, %v163
    %s166 = scalar_lea.vmem %s0, 2
    %s167 = smov 3
    %v168 = vld [vmem:[%s166] ss:$16 sm:%s167]
    %s169 = scalar_lea.vmem %s0, 2
    %s170 = smov 12
    %v171 = vld [vmem:[%s169] ss:$16 sm:%s170]
    %vm172 = vcmask 1043458
    %v173 = vsel %vm172, %v171, %v168
    %174 = vrot.lane.b32.xlu0 %v173, 8
    %v175 = vpop.permute.xlu0 %174
    %vm176 = vcmask 97344
    %177 = vst.msk [vmem:[#allocation0] sm:$0xf] %vm176, %v175
    %s178 = scalar_lea.vmem %s0, 1
    %s179 = smov 3
    %v180 = vld [vmem:[%s178] ss:$16 sm:%s179]
    %s181 = scalar_lea.vmem %s0, 1
    %s182 = smov 12
    %v183 = vld [vmem:[%s181] ss:$16 sm:%s182]
    %vm184 = vcmask 1043458
    %v185 = vsel %vm184, %v183, %v180
    %186 = vrot.lane.b32.xlu0 %v185, 4
    %v187 = vpop.permute.xlu0 %186
    %vm188 = vcmask 64544
    %189 = vst.msk [vmem:[#allocation0] sm:$0xf] %vm188, %v187
    %s191 = sshllo.u32 0, 4
    %v193 = vld [vmem:[#allocation0] sm:%s191]
    %s194 = sshllo.u32 0, 4
    %195 = vst [vmem:[%s1] sm:%s194] %v193

// kernel: sep_conv.1
$region0: #{sep_conv.1}
  #allocation0 [shape = 'u32[]', space=smem, size = 0x4, offset = 0x4, fixed_abs, tag = 'smem constant byte address 0x4 - core index']
  #allocation1 [shape = 'u32[144,128]{1,0:T(1,128)}', space=vmem, size = 0x12000, scoped, tag = 'internal scratch']
  #allocation2 [shape = 'f32[2,32,64]{2,1,0:T(8,128)}', space=vmem, size = 0x8000, scoped, tag = 'scratch operand']
  %s0 = inlined_call_operand.vmem [shape: f32[2,16,64], index: 0, kind: input, shape index: {}]
  %s1 = inlined_call_operand.vmem [shape: f32[3,64,64], index: 1, kind: input, shape index: {}]
  %s2 = inlined_call_operand.vmem [shape: f32[1,4], index: 2, kind: input, shape index: {}]
  %s3 = inlined_call_operand.vmem [shape: f32[1,4], index: 3, kind: input, shape index: {}]
  %s4 = inlined_call_operand.vmem [shape: f32[64,4], index: 4, kind: input, shape index: {}]
  %s5 = inlined_call_operand.vmem [shape: f32[4,64], index: 5, kind: input, shape index: {}]
  %s6 = inlined_call_operand.vmem [shape: f32[3,64,128], index: 6, kind: input, shape index: {}]
  %s7 = inlined_call_operand.vmem [shape: f32[1,8], index: 7, kind: input, shape index: {}]
  %s8 = inlined_call_operand.vmem [shape: f32[1,8], index: 8, kind: input, shape index: {}]
  %s9 = inlined_call_operand.vmem [shape: f32[128,8], index: 9, kind: input, shape index: {}]
  %s10 = inlined_call_operand.vmem [shape: f32[8,128], index: 10, kind: input, shape index: {}]
  %s11 = inlined_call_operand.vmem [shape: f32[32,128], index: 11, kind: output, shape index: {}]
  %s12 = sld [smem:[#allocation0]]
  $region54: #{sep_conv.1} parent=0
    _
  %s14 = ssub.s32 1, %s12
  %s15 = scalar_select 0, %s14, %s12
  // Predicated region
  $region2: #{sep_conv.1} parent=0 // pred_check
    _
  $region3: #{sep_conv.1} parent=0 // pred_check_branch
    %17 = sbr.rel (0) target = $region5
  $region4: #{sep_conv.1} parent=0 // pred_region
    _
  $region5: #{sep_conv.1} parent=0 // pred_fallthru
    _
  // Predicated region
  $region6: #{sep_conv.1} parent=0 // pred_check
    _
  $region7: #{sep_conv.1} parent=0 // pred_check_branch
    %19 = sbr.rel (0) target = $region9
  $region8: #{sep_conv.1} parent=0 // pred_region
    _
  $region9: #{sep_conv.1} parent=0 // pred_fallthru
    _
  // Predicated region
  $region10: #{sep_conv.1} parent=0 // pred_check
    _
  $region11: #{sep_conv.1} parent=0 // pred_check_branch
    %21 = sbr.rel (0) target = $region13
  $region12: #{sep_conv.1} parent=0 // pred_region
    _
  $region13: #{sep_conv.1} parent=0 // pred_fallthru
    _
  // Predicated region
  $region14: #{sep_conv.1} parent=0 // pred_check
    _
  $region15: #{sep_conv.1} parent=0 // pred_check_branch
    %23 = sbr.rel (0) target = $region17
  $region16: #{sep_conv.1} parent=0 // pred_region
    _
  $region17: #{sep_conv.1} parent=0 // pred_fallthru
    _
  // Predicated region
  $region18: #{sep_conv.1} parent=0 // pred_check
    _
  $region19: #{sep_conv.1} parent=0 // pred_check_branch
    %25 = sbr.rel (0) target = $region21
  $region20: #{sep_conv.1} parent=0 // pred_region
    _
  $region21: #{sep_conv.1} parent=0 // pred_fallthru
    _
  // Predicated region
  $region22: #{sep_conv.1} parent=0 // pred_check
    _
  $region23: #{sep_conv.1} parent=0 // pred_check_branch
    %27 = sbr.rel (0) target = $region25
  $region24: #{sep_conv.1} parent=0 // pred_region
    _
  $region25: #{sep_conv.1} parent=0 // pred_fallthru
    _
  // Predicated region
  $region26: #{sep_conv.1} parent=0 // pred_check
    _
  $region27: #{sep_conv.1} parent=0 // pred_check_branch
    %29 = sbr.rel (0) target = $region29
  $region28: #{sep_conv.1} parent=0 // pred_region
    _
  $region29: #{sep_conv.1} parent=0 // pred_fallthru
    _
  // Predicated region
  $region30: #{sep_conv.1} parent=0 // pred_check
    _
  $region31: #{sep_conv.1} parent=0 // pred_check_branch
    %31 = sbr.rel (0) target = $region33
  $region32: #{sep_conv.1} parent=0 // pred_region
    _
  $region33: #{sep_conv.1} parent=0 // pred_fallthru
    _
  // Predicated region
  $region34: #{sep_conv.1} parent=0 // pred_check
    _
  $region35: #{sep_conv.1} parent=0 // pred_check_branch
    %33 = sbr.rel (0) target = $region37
  $region36: #{sep_conv.1} parent=0 // pred_region
    _
  $region37: #{sep_conv.1} parent=0 // pred_fallthru
    _
  // Predicated region
  $region38: #{sep_conv.1} parent=0 // pred_check
    _
  $region39: #{sep_conv.1} parent=0 // pred_check_branch
    %35 = sbr.rel (0) target = $region41
  $region40: #{sep_conv.1} parent=0 // pred_region
    _
  $region41: #{sep_conv.1} parent=0 // pred_fallthru
    _
  // Predicated region
  $region42: #{sep_conv.1} parent=0 // pred_check
    _
  $region43: #{sep_conv.1} parent=0 // pred_check_branch
    %37 = sbr.rel (0) target = $region45
  $region44: #{sep_conv.1} parent=0 // pred_region
    _
  $region45: #{sep_conv.1} parent=0 // pred_fallthru
    _
  %vm38 = vcmask 523264
  %39 = vst.msk [vmem:[#allocation2] sm:$0xff] %vm38, 0.0
  %40 = vst.msk [vmem:[#allocation2 + $0x8] sm:$0xff] %vm38, 0.0
  %41 = vst.msk [vmem:[#allocation2 + $0x10] sm:$0xff] %vm38, 0.0
  %42 = vst.msk [vmem:[#allocation2 + $0x18] sm:$0xff] %vm38, 0.0
  %43 = vst.msk [vmem:[#allocation2 + $0x20] sm:$0xff] %vm38, 0.0
  %44 = vst.msk [vmem:[#allocation2 + $0x28] sm:$0xff] %vm38, 0.0
  %45 = vst.msk [vmem:[#allocation2 + $0x30] sm:$0xff] %vm38, 0.0
  %46 = vst.msk [vmem:[#allocation2 + $0x38] sm:$0xff] %vm38, 0.0
  %v47 = vld [vmem:[%s0] sm:$0xff]
  %v48 = vld [vmem:[%s0 + $0x8] sm:$0xff]
  %v49 = vld [vmem:[%s0 + $0x10] sm:$0xff]
  %v50 = vld [vmem:[%s0 + $0x18] sm:$0xff]
  %v51 = vmax.f32 %v47, 0.0
  %v52 = vmax.f32 %v48, 0.0
  %v53 = vmax.f32 %v49, 0.0
  %v54 = vmax.f32 %v50, 0.0
  %55 = vst.msk [vmem:[#allocation2 + $0x8] sm:$0xff] %vm38, %v51
  %56 = vst.msk [vmem:[#allocation2 + $0x10] sm:$0xff] %vm38, %v52
  %57 = vst.msk [vmem:[#allocation2 + $0x28] sm:$0xff] %vm38, %v53
  %58 = vst.msk [vmem:[#allocation2 + $0x30] sm:$0xff] %vm38, %v54
  %v59 = vld [vmem:[#allocation2 + $0x7] sm:$0xff]
  %v60 = vld [vmem:[#allocation2 + $0xf] sm:$0xff]
  %v61 = vld [vmem:[#allocation2 + $0x27] sm:$0xff]
  %v62 = vld [vmem:[#allocation2 + $0x2f] sm:$0xff]
  %v63 = vld [vmem:[%s1] sm:$0xff]
  %v64 = vld [vmem:[%s1 + $0x8] sm:$0xff]
  %v65 = vld [vmem:[%s1 + $0x10] sm:$0xff]
  %v66 = vld [vmem:[%s1 + $0x18] sm:$0xff]
  %v67 = vld [vmem:[%s1 + $0x20] sm:$0xff]
  %v68 = vld [vmem:[%s1 + $0x28] sm:$0xff]
  %v69 = vld [vmem:[%s1 + $0x30] sm:$0xff]
  %v70 = vld [vmem:[%s1 + $0x38] sm:$0xff]
  %v71 = vld [vmem:[#allocation2 + $0x8] sm:$0xff]
  %v72 = vld [vmem:[#allocation2 + $0x10] sm:$0xff]
  %v73 = vld [vmem:[#allocation2 + $0x28] sm:$0xff]
  %v74 = vld [vmem:[#allocation2 + $0x30] sm:$0xff]
  %s75 = scalar_lea.vmem %s1, 64
  %v76 = vld [vmem:[%s75] sm:$0xff]
  %v77 = vld [vmem:[%s75 + $0x8] sm:$0xff]
  %v78 = vld [vmem:[%s75 + $0x10] sm:$0xff]
  %v79 = vld [vmem:[%s75 + $0x18] sm:$0xff]
  %v80 = vld [vmem:[%s75 + $0x20] sm:$0xff]
  %v81 = vld [vmem:[%s75 + $0x28] sm:$0xff]
  %v82 = vld [vmem:[%s75 + $0x30] sm:$0xff]
  %v83 = vld [vmem:[%s75 + $0x38] sm:$0xff]
  %v85 = vsel %vm38, %v71, 0
  %v88 = vsel %vm38, %v72, 0
  %v91 = vsel %vm38, %v73, 0
  %v94 = vsel %vm38, %v74, 0
  %96 = vmatprep.subr.mxu0 0.0
  %97 = vmatpush1.msra.mxu0 %v76
  %98 = vmatprep.subr.mxu0 0.0
  %99 = vmatpush1.msra.mxu0 %v77
  %100 = vmatprep.subr.mxu0 0.0
  %101 = vmatpush1.msra.mxu0 %v78
  %102 = vmatprep.subr.mxu0 0.0
  %103 = vmatpush1.msra.mxu0 %v79
  %104 = vmatprep.subr.mxu0 0.0
  %105 = vmatpush1.msra.mxu0 %v80
  %106 = vmatprep.subr.mxu0 0.0
  %107 = vmatpush1.msra.mxu0 %v81
  %108 = vmatprep.subr.mxu0 0.0
  %109 = vmatpush1.msra.mxu0 %v82
  %110 = vmatprep.subr.mxu0 0.0
  %111 = vmatpush1.msra.mxu0 %v83
  %112 = vmatprep.subr.mxu0 0.0
  %113 = vmatpush1.msra.mxu0 0.0
  %114 = vmatprep.subr.mxu0 0.0
  %115 = vmatpush1.msra.mxu0 0.0
  %116 = vmatprep.subr.mxu0 0.0
  %117 = vmatpush1.msra.mxu0 0.0
  %118 = vmatprep.subr.mxu0 0.0
  %119 = vmatpush1.msra.mxu0 0.0
  %120 = vmatprep.subr.mxu0 0.0
  %121 = vmatpush1.msra.mxu0 0.0
  %122 = vmatprep.subr.mxu0 0.0
  %123 = vmatpush1.msra.mxu0 0.0
  %124 = vmatprep.subr.mxu0 0.0
  %125 = vmatpush1.msra.mxu0 0.0
  %126 = vmatprep.subr.mxu0 0.0
  %127 = vmatpush1.msra.mxu0 0.0
  %128 = vmatprep.subr.mxu0 0.0
  %129 = vmatpush1.msra.mxu0 0.0
  %130 = vmatprep.subr.mxu0 0.0
  %131 = vmatpush1.msra.mxu0 0.0
  %132 = vmatprep.subr.mxu0 0.0
  %133 = vmatpush1.msra.mxu0 0.0
  %134 = vmatprep.subr.mxu0 0.0
  %135 = vmatpush1.msra.mxu0 0.0
  %136 = vmatprep.subr.mxu0 0.0
  %137 = vmatpush1.msra.mxu0 0.0
  %138 = vmatprep.subr.mxu0 0.0
  %139 = vmatpush1.msra.mxu0 0.0
  %140 = vmatprep.subr.mxu0 0.0
  %141 = vmatpush1.msra.mxu0 0.0
  %142 = vmatprep.subr.mxu0 0.0
  %143 = vmatpush1.msra.mxu0 0.0
  %144 = vmatprep.subr.mxu0 0.0
  %145 = vmatpush1.msra.mxu0 0.0
  %146 = vmatprep.subr.mxu0 0.0
  %147 = vmatpush1.msra.mxu0 0.0
  %148 = vmatprep.subr.mxu0 0.0
  %149 = vmatpush1.msra.mxu0 0.0
  %150 = vmatprep.subr.mxu0 0.0
  %151 = vmatpush1.msra.mxu0 0.0
  %152 = vmatprep.subr.mxu0 0.0
  %153 = vmatpush1.msra.mxu0 0.0
  %154 = vmatprep.subr.mxu0 0.0
  %155 = vmatpush1.msra.mxu0 0.0
  %156 = vmatprep.subr.mxu0 0.0
  %157 = vmatpush1.msra.mxu0 0.0
  %158 = vmatprep.subr.mxu0 0.0
  %159 = vmatpush1.msra.mxu0 0.0
  %160 = vmatprep.mubr.f32.mxu0 0.0
  %161 = vmatmul.mubr.f32.gmra.mrb[0].mxu0 %v85
  %v162 = vpop.f32.mrb[0].mxu0
  %v163 = vadd.f32 0.0, %v162
  %v164 = vpop.f32.mrb[0].mxu0
  %165 = vmatprep.mubr.f32.mxu0 0.0
  %166 = vmatmul.mubr.f32.gmra.mrb[0].mxu0 %v88
  %v167 = vpop.f32.mrb[0].mxu0
  %v168 = vadd.f32 0.0, %v167
  %v169 = vpop.f32.mrb[0].mxu0
  %170 = vmatprep.mubr.f32.mxu0 0.0
  %171 = vmatmul.mubr.f32.gmra.mrb[0].mxu0 %v91
  %v172 = vpop.f32.mrb[0].mxu0
  %v173 = vadd.f32 0.0, %v172
  %v174 = vpop.f32.mrb[0].mxu0
  %175 = vmatprep.mubr.f32.mxu0 0.0
  %176 = vmatmul.mubr.f32.gmra.mrb[0].mxu0 %v94
  %v177 = vpop.f32.mrb[0].mxu0
  %v178 = vadd.f32 0.0, %v177
  %v179 = vpop.f32.mrb[0].mxu0
  %180 = vdwg.mxu0
  %v182 = vsel %vm38, %v59, 0
  %v185 = vsel %vm38, %v60, 0
  %v188 = vsel %vm38, %v61, 0
  %v191 = vsel %vm38, %v62, 0
  %193 = vmatprep.subr.mxu0 0.0
  %194 = vmatpush1.msra.mxu0 %v63
  %195 = vmatprep.subr.mxu0 0.0
  %196 = vmatpush1.msra.mxu0 %v64
  %197 = vmatprep.subr.mxu0 0.0
  %198 = vmatpush1.msra.mxu0 %v65
  %199 = vmatprep.subr.mxu0 0.0
  %200 = vmatpush1.msra.mxu0 %v66
  %201 = vmatprep.subr.mxu0 0.0
  %202 = vmatpush1.msra.mxu0 %v67
  %203 = vmatprep.subr.mxu0 0.0
  %204 = vmatpush1.msra.mxu0 %v68
  %205 = vmatprep.subr.mxu0 0.0
  %206 = vmatpush1.msra.mxu0 %v69
  %207 = vmatprep.subr.mxu0 0.0
  %208 = vmatpush1.msra.mxu0 %v70
  %209 = vmatprep.subr.mxu0 0.0
  %210 = vmatpush1.msra.mxu0 0.0
  %211 = vmatprep.subr.mxu0 0.0
  %212 = vmatpush1.msra.mxu0 0.0
  %213 = vmatprep.subr.mxu0 0.0
  %214 = vmatpush1.msra.mxu0 0.0
  %215 = vmatprep.subr.mxu0 0.0
  %216 = vmatpush1.msra.mxu0 0.0
  %217 = vmatprep.subr.mxu0 0.0
  %218 = vmatpush1.msra.mxu0 0.0
  %219 = vmatprep.subr.mxu0 0.0
  %220 = vmatpush1.msra.mxu0 0.0
  %221 = vmatprep.subr.mxu0 0.0
  %222 = vmatpush1.msra.mxu0 0.0
  %223 = vmatprep.subr.mxu0 0.0
  %224 = vmatpush1.msra.mxu0 0.0
  %225 = vmatprep.subr.mxu0 0.0
  %226 = vmatpush1.msra.mxu0 0.0
  %227 = vmatprep.subr.mxu0 0.0
  %228 = vmatpush1.msra.mxu0 0.0
  %229 = vmatprep.subr.mxu0 0.0
  %230 = vmatpush1.msra.mxu0 0.0
  %231 = vmatprep.subr.mxu0 0.0
  %232 = vmatpush1.msra.mxu0 0.0
  %233 = vmatprep.subr.mxu0 0.0
  %234 = vmatpush1.msra.mxu0 0.0
  %235 = vmatprep.subr.mxu0 0.0
  %236 = vmatpush1.msra.mxu0 0.0
  %237 = vmatprep.subr.mxu0 0.0
  %238 = vmatpush1.msra.mxu0 0.0
  %239 = vmatprep.subr.mxu0 0.0
  %240 = vmatpush1.msra.mxu0 0.0
  %241 = vmatprep.subr.mxu0 0.0
  %242 = vmatpush1.msra.mxu0 0.0
  %243 = vmatprep.subr.mxu0 0.0
  %244 = vmatpush1.msra.mxu0 0.0
  %245 = vmatprep.subr.mxu0 0.0
  %246 = vmatpush1.msra.mxu0 0.0
  %247 = vmatprep.subr.mxu0 0.0
  %248 = vmatpush1.msra.mxu0 0.0
  %249 = vmatprep.subr.mxu0 0.0
  %250 = vmatpush1.msra.mxu0 0.0
  %251 = vmatprep.subr.mxu0 0.0
  %252 = vmatpush1.msra.mxu0 0.0
  %253 = vmatprep.subr.mxu0 0.0
  %254 = vmatpush1.msra.mxu0 0.0
  %255 = vmatprep.subr.mxu0 0.0
  %256 = vmatpush1.msra.mxu0 0.0
  %257 = vmatprep.mubr.f32.mxu0 0.0
  %258 = vmatmul.mubr.f32.gmra.mrb[0].mxu0 %v182
  %v259 = vpop.f32.mrb[0].mxu0
  %v260 = vadd.f32 %v163, %v259
  %v261 = vpop.f32.mrb[0].mxu0
  %262 = vmatprep.mubr.f32.mxu0 0.0
  %263 = vmatmul.mubr.f32.gmra.mrb[0].mxu0 %v185
  %v264 = vpop.f32.mrb[0].mxu0
  %v265 = vadd.f32 %v168, %v264
  %v266 = vpop.f32.mrb[0].mxu0
  %267 = vmatprep.mubr.f32.mxu0 0.0
  %268 = vmatmul.mubr.f32.gmra.mrb[0].mxu0 %v188
  %v269 = vpop.f32.mrb[0].mxu0
  %v270 = vadd.f32 %v173, %v269
  %v271 = vpop.f32.mrb[0].mxu0
  %272 = vmatprep.mubr.f32.mxu0 0.0
  %273 = vmatmul.mubr.f32.gmra.mrb[0].mxu0 %v191
  %v274 = vpop.f32.mrb[0].mxu0
  %v275 = vadd.f32 %v178, %v274
  %v276 = vpop.f32.mrb[0].mxu0
  %277 = vdwg.mxu0
  %v278 = vld [vmem:[#allocation2 + $0x9] sm:$0xff]
  %v279 = vld [vmem:[#allocation2 + $0x11] sm:$0xff]
  %v280 = vld [vmem:[#allocation2 + $0x29] sm:$0xff]
  %v281 = vld [vmem:[#allocation2 + $0x31] sm:$0xff]
  %s282 = scalar_lea.vmem %s1, 128
  %v283 = vld [vmem:[%s282] sm:$0xff]
  %v284 = vld [vmem:[%s282 + $0x8] sm:$0xff]
  %v285 = vld [vmem:[%s282 + $0x10] sm:$0xff]
  %v286 = vld [vmem:[%s282 + $0x18] sm:$0xff]
  %v287 = vld [vmem:[%s282 + $0x20] sm:$0xff]
  %v288 = vld [vmem:[%s282 + $0x28] sm:$0xff]
  %v289 = vld [vmem:[%s282 + $0x30] sm:$0xff]
  %v290 = vld [vmem:[%s282 + $0x38] sm:$0xff]
  %v292 = vsel %vm38, %v278, 0
  %v295 = vsel %vm38, %v279, 0
  %v298 = vsel %vm38, %v280, 0
  %v301 = vsel %vm38, %v281, 0
  %303 = vmatprep.subr.mxu0 0.0
  %304 = vmatpush1.msra.mxu0 %v283
  %305 = vmatprep.subr.mxu0 0.0
  %306 = vmatpush1.msra.mxu0 %v284
  %307 = vmatprep.subr.mxu0 0.0
  %308 = vmatpush1.msra.mxu0 %v285
  %309 = vmatprep.subr.mxu0 0.0
  %310 = vmatpush1.msra.mxu0 %v286
  %311 = vmatprep.subr.mxu0 0.0
  %312 = vmatpush1.msra.mxu0 %v287
  %313 = vmatprep.subr.mxu0 0.0
  %314 = vmatpush1.msra.mxu0 %v288
  %315 = vmatprep.subr.mxu0 0.0
  %316 = vmatpush1.msra.mxu0 %v289
  %317 = vmatprep.subr.mxu0 0.0
  %318 = vmatpush1.msra.mxu0 %v290
  %319 = vmatprep.subr.mxu0 0.0
  %320 = vmatpush1.msra.mxu0 0.0
  %321 = vmatprep.subr.mxu0 0.0
  %322 = vmatpush1.msra.mxu0 0.0
  %323 = vmatprep.subr.mxu0 0.0
  %324 = vmatpush1.msra.mxu0 0.0
  %325 = vmatprep.subr.mxu0 0.0
  %326 = vmatpush1.msra.mxu0 0.0
  %327 = vmatprep.subr.mxu0 0.0
  %328 = vmatpush1.msra.mxu0 0.0
  %329 = vmatprep.subr.mxu0 0.0
  %330 = vmatpush1.msra.mxu0 0.0
  %331 = vmatprep.subr.mxu0 0.0
  %332 = vmatpush1.msra.mxu0 0.0
  %333 = vmatprep.subr.mxu0 0.0
  %334 = vmatpush1.msra.mxu0 0.0
  %335 = vmatprep.subr.mxu0 0.0
  %336 = vmatpush1.msra.mxu0 0.0
  %337 = vmatprep.subr.mxu0 0.0
  %338 = vmatpush1.msra.mxu0 0.0
  %339 = vmatprep.subr.mxu0 0.0
  %340 = vmatpush1.msra.mxu0 0.0
  %341 = vmatprep.subr.mxu0 0.0
  %342 = vmatpush1.msra.mxu0 0.0
  %343 = vmatprep.subr.mxu0 0.0
  %344 = vmatpush1.msra.mxu0 0.0
  %345 = vmatprep.subr.mxu0 0.0
  %346 = vmatpush1.msra.mxu0 0.0
  %347 = vmatprep.subr.mxu0 0.0
  %348 = vmatpush1.msra.mxu0 0.0
  %349 = vmatprep.subr.mxu0 0.0
  %350 = vmatpush1.msra.mxu0 0.0
  %351 = vmatprep.subr.mxu0 0.0
  %352 = vmatpush1.msra.mxu0 0.0
  %353 = vmatprep.subr.mxu0 0.0
  %354 = vmatpush1.msra.mxu0 0.0
  %355 = vmatprep.subr.mxu0 0.0
  %356 = vmatpush1.msra.mxu0 0.0
  %357 = vmatprep.subr.mxu0 0.0
  %358 = vmatpush1.msra.mxu0 0.0
  %359 = vmatprep.subr.mxu0 0.0
  %360 = vmatpush1.msra.mxu0 0.0
  %361 = vmatprep.subr.mxu0 0.0
  %362 = vmatpush1.msra.mxu0 0.0
  %363 = vmatprep.subr.mxu0 0.0
  %364 = vmatpush1.msra.mxu0 0.0
  %365 = vmatprep.subr.mxu0 0.0
  %366 = vmatpush1.msra.mxu0 0.0
  %367 = vmatprep.mubr.f32.mxu0 0.0
  %368 = vmatmul.mubr.f32.gmra.mrb[0].mxu0 %v292
  %v369 = vpop.f32.mrb[0].mxu0
  %v370 = vadd.f32 0.0, %v369
  %v371 = vpop.f32.mrb[0].mxu0
  %372 = vmatprep.mubr.f32.mxu0 0.0
  %373 = vmatmul.mubr.f32.gmra.mrb[0].mxu0 %v295
  %v374 = vpop.f32.mrb[0].mxu0
  %v375 = vadd.f32 0.0, %v374
  %v376 = vpop.f32.mrb[0].mxu0
  %377 = vmatprep.mubr.f32.mxu0 0.0
  %378 = vmatmul.mubr.f32.gmra.mrb[0].mxu0 %v298
  %v379 = vpop.f32.mrb[0].mxu0
  %v380 = vadd.f32 0.0, %v379
  %v381 = vpop.f32.mrb[0].mxu0
  %382 = vmatprep.mubr.f32.mxu0 0.0
  %383 = vmatmul.mubr.f32.gmra.mrb[0].mxu0 %v301
  %v384 = vpop.f32.mrb[0].mxu0
  %v385 = vadd.f32 0.0, %v384
  %v386 = vpop.f32.mrb[0].mxu0
  %387 = vdwg.mxu0
  %v388 = vadd.f32 %v260, %v370
  %v389 = vadd.f32 %v265, %v375
  %v390 = vadd.f32 %v270, %v380
  %v391 = vadd.f32 %v275, %v385
  %v392 = vld [vmem:[%s4] sm:$0xff]
  %v393 = vld [vmem:[%s4 + $0x8] sm:$0xff]
  %v394 = vld [vmem:[%s4 + $0x10] sm:$0xff]
  %v395 = vld [vmem:[%s4 + $0x18] sm:$0xff]
  %v396 = vld [vmem:[%s4 + $0x20] sm:$0xff]
  %v397 = vld [vmem:[%s4 + $0x28] sm:$0xff]
  %v398 = vld [vmem:[%s4 + $0x30] sm:$0xff]
  %v399 = vld [vmem:[%s4 + $0x38] sm:$0xff]
  %v400 = vld [vmem:[%s5] sm:$0xf]
  %v401 = vsel %vm38, %v388, 0.0
  %v402 = vsel %vm38, %v389, 0.0
  %v403 = vadd.f32 %v401, %v402
  %v404 = vsel %vm38, %v390, 0.0
  %v405 = vadd.f32 %v403, %v404
  %v406 = vsel %vm38, %v391, 0.0
  %v407 = vadd.f32 %v405, %v406
  %v408 = vrot.slane %v407, 4
  %v409 = vadd.f32 %v407, %v408
  %v410 = vrot.slane %v409, 2
  %v411 = vadd.f32 %v409, %v410
  %v412 = vrot.slane %v411, 1
  %v413 = vadd.f32 %v411, %v412
  %v415 = vsel %vm38, %v413, 0
  %417 = vmatprep.subr.mxu0 0.0
  %418 = vmatpush1.msra.mxu0 %v392
  %419 = vmatprep.subr.mxu0 0.0
  %420 = vmatpush1.msra.mxu0 %v393
  %421 = vmatprep.subr.mxu0 0.0
  %422 = vmatpush1.msra.mxu0 %v394
  %423 = vmatprep.subr.mxu0 0.0
  %424 = vmatpush1.msra.mxu0 %v395
  %425 = vmatprep.subr.mxu0 0.0
  %426 = vmatpush1.msra.mxu0 %v396
  %427 = vmatprep.subr.mxu0 0.0
  %428 = vmatpush1.msra.mxu0 %v397
  %429 = vmatprep.subr.mxu0 0.0
  %430 = vmatpush1.msra.mxu0 %v398
  %431 = vmatprep.subr.mxu0 0.0
  %432 = vmatpush1.msra.mxu0 %v399
  %433 = vmatprep.subr.mxu0 0.0
  %434 = vmatpush1.msra.mxu0 0.0
  %435 = vmatprep.subr.mxu0 0.0
  %436 = vmatpush1.msra.mxu0 0.0
  %437 = vmatprep.subr.mxu0 0.0
  %438 = vmatpush1.msra.mxu0 0.0
  %439 = vmatprep.subr.mxu0 0.0
  %440 = vmatpush1.msra.mxu0 0.0
  %441 = vmatprep.subr.mxu0 0.0
  %442 = vmatpush1.msra.mxu0 0.0
  %443 = vmatprep.subr.mxu0 0.0
  %444 = vmatpush1.msra.mxu0 0.0
  %445 = vmatprep.subr.mxu0 0.0
  %446 = vmatpush1.msra.mxu0 0.0
  %447 = vmatprep.subr.mxu0 0.0
  %448 = vmatpush1.msra.mxu0 0.0
  %449 = vmatprep.subr.mxu0 0.0
  %450 = vmatpush1.msra.mxu0 0.0
  %451 = vmatprep.subr.mxu0 0.0
  %452 = vmatpush1.msra.mxu0 0.0
  %453 = vmatprep.subr.mxu0 0.0
  %454 = vmatpush1.msra.mxu0 0.0
  %455 = vmatprep.subr.mxu0 0.0
  %456 = vmatpush1.msra.mxu0 0.0
  %457 = vmatprep.subr.mxu0 0.0
  %458 = vmatpush1.msra.mxu0 0.0
  %459 = vmatprep.subr.mxu0 0.0
  %460 = vmatpush1.msra.mxu0 0.0
  %461 = vmatprep.subr.mxu0 0.0
  %462 = vmatpush1.msra.mxu0 0.0
  %463 = vmatprep.subr.mxu0 0.0
  %464 = vmatpush1.msra.mxu0 0.0
  %465 = vmatprep.subr.mxu0 0.0
  %466 = vmatpush1.msra.mxu0 0.0
  %467 = vmatprep.subr.mxu0 0.0
  %468 = vmatpush1.msra.mxu0 0.0
  %469 = vmatprep.subr.mxu0 0.0
  %470 = vmatpush1.msra.mxu0 0.0
  %471 = vmatprep.subr.mxu0 0.0
  %472 = vmatpush1.msra.mxu0 0.0
  %473 = vmatprep.subr.mxu0 0.0
  %474 = vmatpush1.msra.mxu0 0.0
  %475 = vmatprep.subr.mxu0 0.0
  %476 = vmatpush1.msra.mxu0 0.0
  %477 = vmatprep.subr.mxu0 0.0
  %478 = vmatpush1.msra.mxu0 0.0
  %479 = vmatprep.subr.mxu0 0.0
  %480 = vmatpush1.msra.mxu0 0.0
  %481 = vmatprep.mubr.f32.mxu0 0.0
  %482 = vmatmul.mubr.f32.gmra.mrb[0].mxu0 %v415
  %v483 = vpop.f32.mrb[0].mxu0
  %v484 = vadd.f32 0.0, %v483
  %v485 = vpop.f32.mrb[0].mxu0
  %486 = vdwg.mxu0
  %vm487 = vcmask 31744
  %v489 = vsel %vm487, %v484, 0
  %vm491 = vcmask 1043456
  %v493 = vsel %vm491, %v400, 0
  %495 = vmatprep.subr.mxu0 0.0
  %496 = vmatpush1.msra.mxu0 %v493
  %497 = vmatprep.subr.mxu0 0.0
  %498 = vmatpush1.msra.mxu0 0.0
  %499 = vmatprep.subr.mxu0 0.0
  %500 = vmatpush1.msra.mxu0 0.0
  %501 = vmatprep.subr.mxu0 0.0
  %502 = vmatpush1.msra.mxu0 0.0
  %503 = vmatprep.subr.mxu0 0.0
  %504 = vmatpush1.msra.mxu0 0.0
  %505 = vmatprep.subr.mxu0 0.0
  %506 = vmatpush1.msra.mxu0 0.0
  %507 = vmatprep.subr.mxu0 0.0
  %508 = vmatpush1.msra.mxu0 0.0
  %509 = vmatprep.subr.mxu0 0.0
  %510 = vmatpush1.msra.mxu0 0.0
  %511 = vmatprep.subr.mxu0 0.0
  %512 = vmatpush1.msra.mxu0 0.0
  %513 = vmatprep.subr.mxu0 0.0
  %514 = vmatpush1.msra.mxu0 0.0
  %515 = vmatprep.subr.mxu0 0.0
  %516 = vmatpush1.msra.mxu0 0.0
  %517 = vmatprep.subr.mxu0 0.0
  %518 = vmatpush1.msra.mxu0 0.0
  %519 = vmatprep.subr.mxu0 0.0
  %520 = vmatpush1.msra.mxu0 0.0
  %521 = vmatprep.subr.mxu0 0.0
  %522 = vmatpush1.msra.mxu0 0.0
  %523 = vmatprep.subr.mxu0 0.0
  %524 = vmatpush1.msra.mxu0 0.0
  %525 = vmatprep.subr.mxu0 0.0
  %526 = vmatpush1.msra.mxu0 0.0
  %527 = vmatprep.subr.mxu0 0.0
  %528 = vmatpush1.msra.mxu0 0.0
  %529 = vmatprep.subr.mxu0 0.0
  %530 = vmatpush1.msra.mxu0 0.0
  %531 = vmatprep.subr.mxu0 0.0
  %532 = vmatpush1.msra.mxu0 0.0
  %533 = vmatprep.subr.mxu0 0.0
  %534 = vmatpush1.msra.mxu0 0.0
  %535 = vmatprep.subr.mxu0 0.0
  %536 = vmatpush1.msra.mxu0 0.0
  %537 = vmatprep.subr.mxu0 0.0
  %538 = vmatpush1.msra.mxu0 0.0
  %539 = vmatprep.subr.mxu0 0.0
  %540 = vmatpush1.msra.mxu0 0.0
  %541 = vmatprep.subr.mxu0 0.0
  %542 = vmatpush1.msra.mxu0 0.0
  %543 = vmatprep.subr.mxu0 0.0
  %544 = vmatpush1.msra.mxu0 0.0
  %545 = vmatprep.subr.mxu0 0.0
  %546 = vmatpush1.msra.mxu0 0.0
  %547 = vmatprep.subr.mxu0 0.0
  %548 = vmatpush1.msra.mxu0 0.0
  %549 = vmatprep.subr.mxu0 0.0
  %550 = vmatpush1.msra.mxu0 0.0
  %551 = vmatprep.subr.mxu0 0.0
  %552 = vmatpush1.msra.mxu0 0.0
  %553 = vmatprep.subr.mxu0 0.0
  %554 = vmatpush1.msra.mxu0 0.0
  %555 = vmatprep.subr.mxu0 0.0
  %556 = vmatpush1.msra.mxu0 0.0
  %557 = vmatprep.subr.mxu0 0.0
  %558 = vmatpush1.msra.mxu0 0.0
  %559 = vmatprep.mubr.f32.mxu0 0.0
  %560 = vmatmul.mubr.f32.gmra.mrb[0].mxu0 %v489
  %v561 = vpop.f32.mrb[0].mxu0
  %v562 = vadd.f32 0.0, %v561
  %v563 = vpop.f32.mrb[0].mxu0
  %564 = vdwg.mxu0
  %v565 = vlaneseq
  %v566 = vshrl.u32 %v565, 7
  %v567 = vsub.s32 0, %v566
  %v568 = vrot.slane %v562, %v567
  %v569 = vsub.f32 %v388, %v568
  %v570 = vsub.f32 %v389, %v568
  %v571 = vsub.f32 %v390, %v568
  %v572 = vsub.f32 %v391, %v568
  %v573 = vmul.f32 %v569, %v569
  %v574 = vmul.f32 %v570, %v570
  %v575 = vmul.f32 %v571, %v571
  %v576 = vmul.f32 %v572, %v572
  %v577 = vsel %vm38, %v573, 0.0
  %v578 = vsel %vm38, %v574, 0.0
  %v579 = vadd.f32 %v577, %v578
  %v580 = vsel %vm38, %v575, 0.0
  %v581 = vadd.f32 %v579, %v580
  %v582 = vsel %vm38, %v576, 0.0
  %v583 = vadd.f32 %v581, %v582
  %v584 = vrot.slane %v583, 4
  %v585 = vadd.f32 %v583, %v584
  %v586 = vrot.slane %v585, 2
  %v587 = vadd.f32 %v585, %v586
  %v588 = vrot.slane %v587, 1
  %v589 = vadd.f32 %v587, %v588
  %v590 = vld [vmem:[%s2] sm:$0x1]
  %v592 = vsel %vm38, %v589, 0
  %594 = vmatprep.subr.mxu0 0.0
  %595 = vmatpush1.msra.mxu0 %v392
  %596 = vmatprep.subr.mxu0 0.0
  %597 = vmatpush1.msra.mxu0 %v393
  %598 = vmatprep.subr.mxu0 0.0
  %599 = vmatpush1.msra.mxu0 %v394
  %600 = vmatprep.subr.mxu0 0.0
  %601 = vmatpush1.msra.mxu0 %v395
  %602 = vmatprep.subr.mxu0 0.0
  %603 = vmatpush1.msra.mxu0 %v396
  %604 = vmatprep.subr.mxu0 0.0
  %605 = vmatpush1.msra.mxu0 %v397
  %606 = vmatprep.subr.mxu0 0.0
  %607 = vmatpush1.msra.mxu0 %v398
  %608 = vmatprep.subr.mxu0 0.0
  %609 = vmatpush1.msra.mxu0 %v399
  %610 = vmatprep.subr.mxu0 0.0
  %611 = vmatpush1.msra.mxu0 0.0
  %612 = vmatprep.subr.mxu0 0.0
  %613 = vmatpush1.msra.mxu0 0.0
  %614 = vmatprep.subr.mxu0 0.0
  %615 = vmatpush1.msra.mxu0 0.0
  %616 = vmatprep.subr.mxu0 0.0
  %617 = vmatpush1.msra.mxu0 0.0
  %618 = vmatprep.subr.mxu0 0.0
  %619 = vmatpush1.msra.mxu0 0.0
  %620 = vmatprep.subr.mxu0 0.0
  %621 = vmatpush1.msra.mxu0 0.0
  %622 = vmatprep.subr.mxu0 0.0
  %623 = vmatpush1.msra.mxu0 0.0
  %624 = vmatprep.subr.mxu0 0.0
  %625 = vmatpush1.msra.mxu0 0.0
  %626 = vmatprep.subr.mxu0 0.0
  %627 = vmatpush1.msra.mxu0 0.0
  %628 = vmatprep.subr.mxu0 0.0
  %629 = vmatpush1.msra.mxu0 0.0
  %630 = vmatprep.subr.mxu0 0.0
  %631 = vmatpush1.msra.mxu0 0.0
  %632 = vmatprep.subr.mxu0 0.0
  %633 = vmatpush1.msra.mxu0 0.0
  %634 = vmatprep.subr.mxu0 0.0
  %635 = vmatpush1.msra.mxu0 0.0
  %636 = vmatprep.subr.mxu0 0.0
  %637 = vmatpush1.msra.mxu0 0.0
  %638 = vmatprep.subr.mxu0 0.0
  %639 = vmatpush1.msra.mxu0 0.0
  %640 = vmatprep.subr.mxu0 0.0
  %641 = vmatpush1.msra.mxu0 0.0
  %642 = vmatprep.subr.mxu0 0.0
  %643 = vmatpush1.msra.mxu0 0.0
  %644 = vmatprep.subr.mxu0 0.0
  %645 = vmatpush1.msra.mxu0 0.0
  %646 = vmatprep.subr.mxu0 0.0
  %647 = vmatpush1.msra.mxu0 0.0
  %648 = vmatprep.subr.mxu0 0.0
  %649 = vmatpush1.msra.mxu0 0.0
  %650 = vmatprep.subr.mxu0 0.0
  %651 = vmatpush1.msra.mxu0 0.0
  %652 = vmatprep.subr.mxu0 0.0
  %653 = vmatpush1.msra.mxu0 0.0
  %654 = vmatprep.subr.mxu0 0.0
  %655 = vmatpush1.msra.mxu0 0.0
  %656 = vmatprep.subr.mxu0 0.0
  %657 = vmatpush1.msra.mxu0 0.0
  %658 = vmatprep.mubr.f32.mxu0 0.0
  %659 = vmatmul.mubr.f32.gmra.mrb[0].mxu0 %v592
  %v660 = vpop.f32.mrb[0].mxu0
  %v661 = vadd.f32 1e-05, %v660
  %v662 = vpop.f32.mrb[0].mxu0
  %663 = vdwg.mxu0
  %v664 = vrsqrt.pop %v661
  %v665 = vmul.f32 %v590, %v664
  %v667 = vsel %vm487, %v665, 0
  %669 = vmatprep.subr.mxu0 0.0
  %670 = vmatpush1.msra.mxu0 %v493
  %671 = vmatprep.subr.mxu0 0.0
  %672 = vmatpush1.msra.mxu0 0.0
  %673 = vmatprep.subr.mxu0 0.0
  %674 = vmatpush1.msra.mxu0 0.0
  %675 = vmatprep.subr.mxu0 0.0
  %676 = vmatpush1.msra.mxu0 0.0
  %677 = vmatprep.subr.mxu0 0.0
  %678 = vmatpush1.msra.mxu0 0.0
  %679 = vmatprep.subr.mxu0 0.0
  %680 = vmatpush1.msra.mxu0 0.0
  %681 = vmatprep.subr.mxu0 0.0
  %682 = vmatpush1.msra.mxu0 0.0
  %683 = vmatprep.subr.mxu0 0.0
  %684 = vmatpush1.msra.mxu0 0.0
  %685 = vmatprep.subr.mxu0 0.0
  %686 = vmatpush1.msra.mxu0 0.0
  %687 = vmatprep.subr.mxu0 0.0
  %688 = vmatpush1.msra.mxu0 0.0
  %689 = vmatprep.subr.mxu0 0.0
  %690 = vmatpush1.msra.mxu0 0.0
  %691 = vmatprep.subr.mxu0 0.0
  %692 = vmatpush1.msra.mxu0 0.0
  %693 = vmatprep.subr.mxu0 0.0
  %694 = vmatpush1.msra.mxu0 0.0
  %695 = vmatprep.subr.mxu0 0.0
  %696 = vmatpush1.msra.mxu0 0.0
  %697 = vmatprep.subr.mxu0 0.0
  %698 = vmatpush1.msra.mxu0 0.0
  %699 = vmatprep.subr.mxu0 0.0
  %700 = vmatpush1.msra.mxu0 0.0
  %701 = vmatprep.subr.mxu0 0.0
  %702 = vmatpush1.msra.mxu0 0.0
  %703 = vmatprep.subr.mxu0 0.0
  %704 = vmatpush1.msra.mxu0 0.0
  %705 = vmatprep.subr.mxu0 0.0
  %706 = vmatpush1.msra.mxu0 0.0
  %707 = vmatprep.subr.mxu0 0.0
  %708 = vmatpush1.msra.mxu0 0.0
  %709 = vmatprep.subr.mxu0 0.0
  %710 = vmatpush1.msra.mxu0 0.0
  %711 = vmatprep.subr.mxu0 0.0
  %712 = vmatpush1.msra.mxu0 0.0
  %713 = vmatprep.subr.mxu0 0.0
  %714 = vmatpush1.msra.mxu0 0.0
  %715 = vmatprep.subr.mxu0 0.0
  %716 = vmatpush1.msra.mxu0 0.0
  %717 = vmatprep.subr.mxu0 0.0
  %718 = vmatpush1.msra.mxu0 0.0
  %719 = vmatprep.subr.mxu0 0.0
  %720 = vmatpush1.msra.mxu0 0.0
  %721 = vmatprep.subr.mxu0 0.0
  %722 = vmatpush1.msra.mxu0 0.0
  %723 = vmatprep.subr.mxu0 0.0
  %724 = vmatpush1.msra.mxu0 0.0
  %725 = vmatprep.subr.mxu0 0.0
  %726 = vmatpush1.msra.mxu0 0.0
  %727 = vmatprep.subr.mxu0 0.0
  %728 = vmatpush1.msra.mxu0 0.0
  %729 = vmatprep.subr.mxu0 0.0
  %730 = vmatpush1.msra.mxu0 0.0
  %731 = vmatprep.subr.mxu0 0.0
  %732 = vmatpush1.msra.mxu0 0.0
  %733 = vmatprep.mubr.f32.mxu0 0.0
  %734 = vmatmul.mubr.f32.gmra.mrb[0].mxu0 %v667
  %v735 = vpop.f32.mrb[0].mxu0
  %v736 = vadd.f32 0.0, %v735
  %v737 = vpop.f32.mrb[0].mxu0
  %738 = vdwg.mxu0
  %v739 = vld [vmem:[%s3] sm:$0x1]
  %v741 = vsel %vm487, %v739, 0
  %743 = vmatprep.subr.mxu0 0.0
  %744 = vmatpush1.msra.mxu0 %v493
  %745 = vmatprep.subr.mxu0 0.0
  %746 = vmatpush1.msra.mxu0 0.0
  %747 = vmatprep.subr.mxu0 0.0
  %748 = vmatpush1.msra.mxu0 0.0
  %749 = vmatprep.subr.mxu0 0.0
  %750 = vmatpush1.msra.mxu0 0.0
  %751 = vmatprep.subr.mxu0 0.0
  %752 = vmatpush1.msra.mxu0 0.0
  %753 = vmatprep.subr.mxu0 0.0
  %754 = vmatpush1.msra.mxu0 0.0
  %755 = vmatprep.subr.mxu0 0.0
  %756 = vmatpush1.msra.mxu0 0.0
  %757 = vmatprep.subr.mxu0 0.0
  %758 = vmatpush1.msra.mxu0 0.0
  %759 = vmatprep.subr.mxu0 0.0
  %760 = vmatpush1.msra.mxu0 0.0
  %761 = vmatprep.subr.mxu0 0.0
  %762 = vmatpush1.msra.mxu0 0.0
  %763 = vmatprep.subr.mxu0 0.0
  %764 = vmatpush1.msra.mxu0 0.0
  %765 = vmatprep.subr.mxu0 0.0
  %766 = vmatpush1.msra.mxu0 0.0
  %767 = vmatprep.subr.mxu0 0.0
  %768 = vmatpush1.msra.mxu0 0.0
  %769 = vmatprep.subr.mxu0 0.0
  %770 = vmatpush1.msra.mxu0 0.0
  %771 = vmatprep.subr.mxu0 0.0
  %772 = vmatpush1.msra.mxu0 0.0
  %773 = vmatprep.subr.mxu0 0.0
  %774 = vmatpush1.msra.mxu0 0.0
  %775 = vmatprep.subr.mxu0 0.0
  %776 = vmatpush1.msra.mxu0 0.0
  %777 = vmatprep.subr.mxu0 0.0
  %778 = vmatpush1.msra.mxu0 0.0
  %779 = vmatprep.subr.mxu0 0.0
  %780 = vmatpush1.msra.mxu0 0.0
  %781 = vmatprep.subr.mxu0 0.0
  %782 = vmatpush1.msra.mxu0 0.0
  %783 = vmatprep.subr.mxu0 0.0
  %784 = vmatpush1.msra.mxu0 0.0
  %785 = vmatprep.subr.mxu0 0.0
  %786 = vmatpush1.msra.mxu0 0.0
  %787 = vmatprep.subr.mxu0 0.0
  %788 = vmatpush1.msra.mxu0 0.0
  %789 = vmatprep.subr.mxu0 0.0
  %790 = vmatpush1.msra.mxu0 0.0
  %791 = vmatprep.subr.mxu0 0.0
  %792 = vmatpush1.msra.mxu0 0.0
  %793 = vmatprep.subr.mxu0 0.0
  %794 = vmatpush1.msra.mxu0 0.0
  %795 = vmatprep.subr.mxu0 0.0
  %796 = vmatpush1.msra.mxu0 0.0
  %797 = vmatprep.subr.mxu0 0.0
  %798 = vmatpush1.msra.mxu0 0.0
  %799 = vmatprep.subr.mxu0 0.0
  %800 = vmatpush1.msra.mxu0 0.0
  %801 = vmatprep.subr.mxu0 0.0
  %802 = vmatpush1.msra.mxu0 0.0
  %803 = vmatprep.subr.mxu0 0.0
  %804 = vmatpush1.msra.mxu0 0.0
  %805 = vmatprep.subr.mxu0 0.0
  %806 = vmatpush1.msra.mxu0 0.0
  %807 = vmatprep.mubr.f32.mxu0 0.0
  %808 = vmatmul.mubr.f32.gmra.mrb[0].mxu0 %v741
  %v809 = vpop.f32.mrb[0].mxu0
  %v810 = vadd.f32 0.0, %v809
  %v811 = vpop.f32.mrb[0].mxu0
  %812 = vdwg.mxu0
  %v813 = vlaneseq
  %v814 = vshrl.u32 %v813, 7
  %v815 = vsub.s32 0, %v814
  %v816 = vrot.slane %v736, %v815
  %v817 = vmul.f32 %v569, %v816
  %v818 = vmul.f32 %v570, %v816
  %v819 = vmul.f32 %v571, %v816
  %v820 = vmul.f32 %v572, %v816
  %v821 = vlaneseq
  %v822 = vshrl.u32 %v821, 7
  %v823 = vsub.s32 0, %v822
  %v824 = vrot.slane %v810, %v823
  %v825 = vadd.f32 %v817, %v824
  %v826 = vadd.f32 %v818, %v824
  %v827 = vadd.f32 %v819, %v824
  %v828 = vadd.f32 %v820, %v824
  %v829 = vmax.f32 %v825, 0.0
  %v830 = vmax.f32 %v826, 0.0
  %v831 = vmax.f32 %v827, 0.0
  %v832 = vmax.f32 %v828, 0.0
  %833 = vst.msk [vmem:[#allocation2 + $0x8] sm:$0xff] %vm38, %v829
  %834 = vst.msk [vmem:[#allocation2 + $0x10] sm:$0xff] %vm38, %v830
  %835 = vst.msk [vmem:[#allocation2 + $0x28] sm:$0xff] %vm38, %v831
  %836 = vst.msk [vmem:[#allocation2 + $0x30] sm:$0xff] %vm38, %v832
  %v837 = vld [vmem:[#allocation2 + $0x7] sm:$0xff]
  %v838 = vld [vmem:[#allocation2 + $0xf] sm:$0xff]
  %v839 = vld [vmem:[#allocation2 + $0x27] sm:$0xff]
  %v840 = vld [vmem:[#allocation2 + $0x2f] sm:$0xff]
  %v841 = vld [vmem:[%s6] sm:$0xff]
  %v842 = vld [vmem:[%s6 + $0x8] sm:$0xff]
  %v843 = vld [vmem:[%s6 + $0x10] sm:$0xff]
  %v844 = vld [vmem:[%s6 + $0x18] sm:$0xff]
  %v845 = vld [vmem:[%s6 + $0x20] sm:$0xff]
  %v846 = vld [vmem:[%s6 + $0x28] sm:$0xff]
  %v847 = vld [vmem:[%s6 + $0x30] sm:$0xff]
  %v848 = vld [vmem:[%s6 + $0x38] sm:$0xff]
  %v849 = vld [vmem:[#allocation2 + $0x8] sm:$0xff]
  %v850 = vld [vmem:[#allocation2 + $0x10] sm:$0xff]
  %v851 = vld [vmem:[#allocation2 + $0x28] sm:$0xff]
  %v852 = vld [vmem:[#allocation2 + $0x30] sm:$0xff]
  %s853 = scalar_lea.vmem %s6, 64
  %v854 = vld [vmem:[%s853] sm:$0xff]
  %v855 = vld [vmem:[%s853 + $0x8] sm:$0xff]
  %v856 = vld [vmem:[%s853 + $0x10] sm:$0xff]
  %v857 = vld [vmem:[%s853 + $0x18] sm:$0xff]
  %v858 = vld [vmem:[%s853 + $0x20] sm:$0xff]
  %v859 = vld [vmem:[%s853 + $0x28] sm:$0xff]
  %v860 = vld [vmem:[%s853 + $0x30] sm:$0xff]
  %v861 = vld [vmem:[%s853 + $0x38] sm:$0xff]
  %v863 = vsel %vm38, %v849, 0
  %v866 = vsel %vm38, %v850, 0
  %v869 = vsel %vm38, %v851, 0
  %v872 = vsel %vm38, %v852, 0
  %874 = vmatprep.subr.mxu0 0.0
  %875 = vmatpush1.msra.mxu0 %v854
  %876 = vmatprep.subr.mxu0 0.0
  %877 = vmatpush1.msra.mxu0 %v855
  %878 = vmatprep.subr.mxu0 0.0
  %879 = vmatpush1.msra.mxu0 %v856
  %880 = vmatprep.subr.mxu0 0.0
  %881 = vmatpush1.msra.mxu0 %v857
  %882 = vmatprep.subr.mxu0 0.0
  %883 = vmatpush1.msra.mxu0 %v858
  %884 = vmatprep.subr.mxu0 0.0
  %885 = vmatpush1.msra.mxu0 %v859
  %886 = vmatprep.subr.mxu0 0.0
  %887 = vmatpush1.msra.mxu0 %v860
  %888 = vmatprep.subr.mxu0 0.0
  %889 = vmatpush1.msra.mxu0 %v861
  %890 = vmatprep.subr.mxu0 0.0
  %891 = vmatpush1.msra.mxu0 0.0
  %892 = vmatprep.subr.mxu0 0.0
  %893 = vmatpush1.msra.mxu0 0.0
  %894 = vmatprep.subr.mxu0 0.0
  %895 = vmatpush1.msra.mxu0 0.0
  %896 = vmatprep.subr.mxu0 0.0
  %897 = vmatpush1.msra.mxu0 0.0
  %898 = vmatprep.subr.mxu0 0.0
  %899 = vmatpush1.msra.mxu0 0.0
  %900 = vmatprep.subr.mxu0 0.0
  %901 = vmatpush1.msra.mxu0 0.0
  %902 = vmatprep.subr.mxu0 0.0
  %903 = vmatpush1.msra.mxu0 0.0
  %904 = vmatprep.subr.mxu0 0.0
  %905 = vmatpush1.msra.mxu0 0.0
  %906 = vmatprep.subr.mxu0 0.0
  %907 = vmatpush1.msra.mxu0 0.0
  %908 = vmatprep.subr.mxu0 0.0
  %909 = vmatpush1.msra.mxu0 0.0
  %910 = vmatprep.subr.mxu0 0.0
  %911 = vmatpush1.msra.mxu0 0.0
  %912 = vmatprep.subr.mxu0 0.0
  %913 = vmatpush1.msra.mxu0 0.0
  %914 = vmatprep.subr.mxu0 0.0
  %915 = vmatpush1.msra.mxu0 0.0
  %916 = vmatprep.subr.mxu0 0.0
  %917 = vmatpush1.msra.mxu0 0.0
  %918 = vmatprep.subr.mxu0 0.0
  %919 = vmatpush1.msra.mxu0 0.0
  %920 = vmatprep.subr.mxu0 0.0
  %921 = vmatpush1.msra.mxu0 0.0
  %922 = vmatprep.subr.mxu0 0.0
  %923 = vmatpush1.msra.mxu0 0.0
  %924 = vmatprep.subr.mxu0 0.0
  %925 = vmatpush1.msra.mxu0 0.0
  %926 = vmatprep.subr.mxu0 0.0
  %927 = vmatpush1.msra.mxu0 0.0
  %928 = vmatprep.subr.mxu0 0.0
  %929 = vmatpush1.msra.mxu0 0.0
  %930 = vmatprep.subr.mxu0 0.0
  %931 = vmatpush1.msra.mxu0 0.0
  %932 = vmatprep.subr.mxu0 0.0
  %933 = vmatpush1.msra.mxu0 0.0
  %934 = vmatprep.subr.mxu0 0.0
  %935 = vmatpush1.msra.mxu0 0.0
  %936 = vmatprep.subr.mxu0 0.0
  %937 = vmatpush1.msra.mxu0 0.0
  %938 = vmatprep.mubr.f32.mxu0 0.0
  %939 = vmatmul.mubr.f32.gmra.mrb[0].mxu0 %v863
  %v940 = vpop.f32.mrb[0].mxu0
  %v941 = vadd.f32 0.0, %v940
  %v942 = vpop.f32.mrb[0].mxu0
  %943 = vmatprep.mubr.f32.mxu0 0.0
  %944 = vmatmul.mubr.f32.gmra.mrb[0].mxu0 %v866
  %v945 = vpop.f32.mrb[0].mxu0
  %v946 = vadd.f32 0.0, %v945
  %v947 = vpop.f32.mrb[0].mxu0
  %948 = vmatprep.mubr.f32.mxu0 0.0
  %949 = vmatmul.mubr.f32.gmra.mrb[0].mxu0 %v869
  %v950 = vpop.f32.mrb[0].mxu0
  %v951 = vadd.f32 0.0, %v950
  %v952 = vpop.f32.mrb[0].mxu0
  %953 = vmatprep.mubr.f32.mxu0 0.0
  %954 = vmatmul.mubr.f32.gmra.mrb[0].mxu0 %v872
  %v955 = vpop.f32.mrb[0].mxu0
  %v956 = vadd.f32 0.0, %v955
  %v957 = vpop.f32.mrb[0].mxu0
  %958 = vdwg.mxu0
  %v960 = vsel %vm38, %v837, 0
  %v963 = vsel %vm38, %v838, 0
  %v966 = vsel %vm38, %v839, 0
  %v969 = vsel %vm38, %v840, 0
  %971 = vmatprep.subr.mxu0 0.0
  %972 = vmatpush1.msra.mxu0 %v841
  %973 = vmatprep.subr.mxu0 0.0
  %974 = vmatpush1.msra.mxu0 %v842
  %975 = vmatprep.subr.mxu0 0.0
  %976 = vmatpush1.msra.mxu0 %v843
  %977 = vmatprep.subr.mxu0 0.0
  %978 = vmatpush1.msra.mxu0 %v844
  %979 = vmatprep.subr.mxu0 0.0
  %980 = vmatpush1.msra.mxu0 %v845
  %981 = vmatprep.subr.mxu0 0.0
  %982 = vmatpush1.msra.mxu0 %v846
  %983 = vmatprep.subr.mxu0 0.0
  %984 = vmatpush1.msra.mxu0 %v847
  %985 = vmatprep.subr.mxu0 0.0
  %986 = vmatpush1.msra.mxu0 %v848
  %987 = vmatprep.subr.mxu0 0.0
  %988 = vmatpush1.msra.mxu0 0.0
  %989 = vmatprep.subr.mxu0 0.0
  %990 = vmatpush1.msra.mxu0 0.0
  %991 = vmatprep.subr.mxu0 0.0
  %992 = vmatpush1.msra.mxu0 0.0
  %993 = vmatprep.subr.mxu0 0.0
  %994 = vmatpush1.msra.mxu0 0.0
  %995 = vmatprep.subr.mxu0 0.0
  %996 = vmatpush1.msra.mxu0 0.0
  %997 = vmatprep.subr.mxu0 0.0
  %998 = vmatpush1.msra.mxu0 0.0
  %999 = vmatprep.subr.mxu0 0.0
  %1000 = vmatpush1.msra.mxu0 0.0
  %1001 = vmatprep.subr.mxu0 0.0
  %1002 = vmatpush1.msra.mxu0 0.0
  %1003 = vmatprep.subr.mxu0 0.0
  %1004 = vmatpush1.msra.mxu0 0.0
  %1005 = vmatprep.subr.mxu0 0.0
  %1006 = vmatpush1.msra.mxu0 0.0
  %1007 = vmatprep.subr.mxu0 0.0
  %1008 = vmatpush1.msra.mxu0 0.0
  %1009 = vmatprep.subr.mxu0 0.0
  %1010 = vmatpush1.msra.mxu0 0.0
  %1011 = vmatprep.subr.mxu0 0.0
  %1012 = vmatpush1.msra.mxu0 0.0
  %1013 = vmatprep.subr.mxu0 0.0
  %1014 = vmatpush1.msra.mxu0 0.0
  %1015 = vmatprep.subr.mxu0 0.0
  %1016 = vmatpush1.msra.mxu0 0.0
  %1017 = vmatprep.subr.mxu0 0.0
  %1018 = vmatpush1.msra.mxu0 0.0
  %1019 = vmatprep.subr.mxu0 0.0
  %1020 = vmatpush1.msra.mxu0 0.0
  %1021 = vmatprep.subr.mxu0 0.0
  %1022 = vmatpush1.msra.mxu0 0.0
  %1023 = vmatprep.subr.mxu0 0.0
  %1024 = vmatpush1.msra.mxu0 0.0
  %1025 = vmatprep.subr.mxu0 0.0
  %1026 = vmatpush1.msra.mxu0 0.0
  %1027 = vmatprep.subr.mxu0 0.0
  %1028 = vmatpush1.msra.mxu0 0.0
  %1029 = vmatprep.subr.mxu0 0.0
  %1030 = vmatpush1.msra.mxu0 0.0
  %1031 = vmatprep.subr.mxu0 0.0
  %1032 = vmatpush1.msra.mxu0 0.0
  %1033 = vmatprep.subr.mxu0 0.0
  %1034 = vmatpush1.msra.mxu0 0.0
  %1035 = vmatprep.mubr.f32.mxu0 0.0
  %1036 = vmatmul.mubr.f32.gmra.mrb[0].mxu0 %v960
  %v1037 = vpop.f32.mrb[0].mxu0
  %v1038 = vadd.f32 %v941, %v1037
  %v1039 = vpop.f32.mrb[0].mxu0
  %1040 = vmatprep.mubr.f32.mxu0 0.0
  %1041 = vmatmul.mubr.f32.gmra.mrb[0].mxu0 %v963
  %v1042 = vpop.f32.mrb[0].mxu0
  %v1043 = vadd.f32 %v946, %v1042
  %v1044 = vpop.f32.mrb[0].mxu0
  %1045 = vmatprep.mubr.f32.mxu0 0.0
  %1046 = vmatmul.mubr.f32.gmra.mrb[0].mxu0 %v966
  %v1047 = vpop.f32.mrb[0].mxu0
  %v1048 = vadd.f32 %v951, %v1047
  %v1049 = vpop.f32.mrb[0].mxu0
  %1050 = vmatprep.mubr.f32.mxu0 0.0
  %1051 = vmatmul.mubr.f32.gmra.mrb[0].mxu0 %v969
  %v1052 = vpop.f32.mrb[0].mxu0
  %v1053 = vadd.f32 %v956, %v1052
  %v1054 = vpop.f32.mrb[0].mxu0
  %1055 = vdwg.mxu0
  %v1056 = vld [vmem:[#allocation2 + $0x9] sm:$0xff]
  %v1057 = vld [vmem:[#allocation2 + $0x11] sm:$0xff]
  %v1058 = vld [vmem:[#allocation2 + $0x29] sm:$0xff]
  %v1059 = vld [vmem:[#allocation2 + $0x31] sm:$0xff]
  %s1060 = scalar_lea.vmem %s6, 128
  %v1061 = vld [vmem:[%s1060] sm:$0xff]
  %v1062 = vld [vmem:[%s1060 + $0x8] sm:$0xff]
  %v1063 = vld [vmem:[%s1060 + $0x10] sm:$0xff]
  %v1064 = vld [vmem:[%s1060 + $0x18] sm:$0xff]
  %v1065 = vld [vmem:[%s1060 + $0x20] sm:$0xff]
  %v1066 = vld [vmem:[%s1060 + $0x28] sm:$0xff]
  %v1067 = vld [vmem:[%s1060 + $0x30] sm:$0xff]
  %v1068 = vld [vmem:[%s1060 + $0x38] sm:$0xff]
  %v1070 = vsel %vm38, %v1056, 0
  %v1073 = vsel %vm38, %v1057, 0
  %v1076 = vsel %vm38, %v1058, 0
  %v1079 = vsel %vm38, %v1059, 0
  %1081 = vmatprep.subr.mxu0 0.0
  %1082 = vmatpush1.msra.mxu0 %v1061
  %1083 = vmatprep.subr.mxu0 0.0
  %1084 = vmatpush1.msra.mxu0 %v1062
  %1085 = vmatprep.subr.mxu0 0.0
  %1086 = vmatpush1.msra.mxu0 %v1063
  %1087 = vmatprep.subr.mxu0 0.0
  %1088 = vmatpush1.msra.mxu0 %v1064
  %1089 = vmatprep.subr.mxu0 0.0
  %1090 = vmatpush1.msra.mxu0 %v1065
  %1091 = vmatprep.subr.mxu0 0.0
  %1092 = vmatpush1.msra.mxu0 %v1066
  %1093 = vmatprep.subr.mxu0 0.0
  %1094 = vmatpush1.msra.mxu0 %v1067
  %1095 = vmatprep.subr.mxu0 0.0
  %1096 = vmatpush1.msra.mxu0 %v1068
  %1097 = vmatprep.subr.mxu0 0.0
  %1098 = vmatpush1.msra.mxu0 0.0
  %1099 = vmatprep.subr.mxu0 0.0
  %1100 = vmatpush1.msra.mxu0 0.0
  %1101 = vmatprep.subr.mxu0 0.0
  %1102 = vmatpush1.msra.mxu0 0.0
  %1103 = vmatprep.subr.mxu0 0.0
  %1104 = vmatpush1.msra.mxu0 0.0
  %1105 = vmatprep.subr.mxu0 0.0
  %1106 = vmatpush1.msra.mxu0 0.0
  %1107 = vmatprep.subr.mxu0 0.0
  %1108 = vmatpush1.msra.mxu0 0.0
  %1109 = vmatprep.subr.mxu0 0.0
  %1110 = vmatpush1.msra.mxu0 0.0
  %1111 = vmatprep.subr.mxu0 0.0
  %1112 = vmatpush1.msra.mxu0 0.0
  %1113 = vmatprep.subr.mxu0 0.0
  %1114 = vmatpush1.msra.mxu0 0.0
  %1115 = vmatprep.subr.mxu0 0.0
  %1116 = vmatpush1.msra.mxu0 0.0
  %1117 = vmatprep.subr.mxu0 0.0
  %1118 = vmatpush1.msra.mxu0 0.0
  %1119 = vmatprep.subr.mxu0 0.0
  %1120 = vmatpush1.msra.mxu0 0.0
  %1121 = vmatprep.subr.mxu0 0.0
  %1122 = vmatpush1.msra.mxu0 0.0
  %1123 = vmatprep.subr.mxu0 0.0
  %1124 = vmatpush1.msra.mxu0 0.0
  %1125 = vmatprep.subr.mxu0 0.0
  %1126 = vmatpush1.msra.mxu0 0.0
  %1127 = vmatprep.subr.mxu0 0.0
  %1128 = vmatpush1.msra.mxu0 0.0
  %1129 = vmatprep.subr.mxu0 0.0
  %1130 = vmatpush1.msra.mxu0 0.0
  %1131 = vmatprep.subr.mxu0 0.0
  %1132 = vmatpush1.msra.mxu0 0.0
  %1133 = vmatprep.subr.mxu0 0.0
  %1134 = vmatpush1.msra.mxu0 0.0
  %1135 = vmatprep.subr.mxu0 0.0
  %1136 = vmatpush1.msra.mxu0 0.0
  %1137 = vmatprep.subr.mxu0 0.0
  %1138 = vmatpush1.msra.mxu0 0.0
  %1139 = vmatprep.subr.mxu0 0.0
  %1140 = vmatpush1.msra.mxu0 0.0
  %1141 = vmatprep.subr.mxu0 0.0
  %1142 = vmatpush1.msra.mxu0 0.0
  %1143 = vmatprep.subr.mxu0 0.0
  %1144 = vmatpush1.msra.mxu0 0.0
  %1145 = vmatprep.mubr.f32.mxu0 0.0
  %1146 = vmatmul.mubr.f32.gmra.mrb[0].mxu0 %v1070
  %v1147 = vpop.f32.mrb[0].mxu0
  %v1148 = vadd.f32 0.0, %v1147
  %v1149 = vpop.f32.mrb[0].mxu0
  %1150 = vmatprep.mubr.f32.mxu0 0.0
  %1151 = vmatmul.mubr.f32.gmra.mrb[0].mxu0 %v1073
  %v1152 = vpop.f32.mrb[0].mxu0
  %v1153 = vadd.f32 0.0, %v1152
  %v1154 = vpop.f32.mrb[0].mxu0
  %1155 = vmatprep.mubr.f32.mxu0 0.0
  %1156 = vmatmul.mubr.f32.gmra.mrb[0].mxu0 %v1076
  %v1157 = vpop.f32.mrb[0].mxu0
  %v1158 = vadd.f32 0.0, %v1157
  %v1159 = vpop.f32.mrb[0].mxu0
  %1160 = vmatprep.mubr.f32.mxu0 0.0
  %1161 = vmatmul.mubr.f32.gmra.mrb[0].mxu0 %v1079
  %v1162 = vpop.f32.mrb[0].mxu0
  %v1163 = vadd.f32 0.0, %v1162
  %v1164 = vpop.f32.mrb[0].mxu0
  %1165 = vdwg.mxu0
  %v1166 = vadd.f32 %v1038, %v1148
  %v1167 = vadd.f32 %v1043, %v1153
  %v1168 = vadd.f32 %v1048, %v1158
  %v1169 = vadd.f32 %v1053, %v1163
  %v1170 = vld [vmem:[%s9] sm:$0xff]
  %v1171 = vld [vmem:[%s9 + $0x8] sm:$0xff]
  %v1172 = vld [vmem:[%s9 + $0x10] sm:$0xff]
  %v1173 = vld [vmem:[%s9 + $0x18] sm:$0xff]
  %v1174 = vld [vmem:[%s9 + $0x20] sm:$0xff]
  %v1175 = vld [vmem:[%s9 + $0x28] sm:$0xff]
  %v1176 = vld [vmem:[%s9 + $0x30] sm:$0xff]
  %v1177 = vld [vmem:[%s9 + $0x38] sm:$0xff]
  %v1178 = vld [vmem:[%s9 + $0x40] sm:$0xff]
  %v1179 = vld [vmem:[%s9 + $0x48] sm:$0xff]
  %v1180 = vld [vmem:[%s9 + $0x50] sm:$0xff]
  %v1181 = vld [vmem:[%s9 + $0x58] sm:$0xff]
  %v1182 = vld [vmem:[%s9 + $0x60] sm:$0xff]
  %v1183 = vld [vmem:[%s9 + $0x68] sm:$0xff]
  %v1184 = vld [vmem:[%s9 + $0x70] sm:$0xff]
  %v1185 = vld [vmem:[%s9 + $0x78] sm:$0xff]
  %v1186 = vld [vmem:[%s10] sm:$0xff]
  %v1187 = vadd.f32 %v1166, %v1167
  %v1188 = vadd.f32 %v1187, %v1168
  %v1189 = vadd.f32 %v1188, %v1169
  %v1190 = vrot.slane %v1189, 4
  %v1191 = vadd.f32 %v1189, %v1190
  %v1192 = vrot.slane %v1191, 2
  %v1193 = vadd.f32 %v1191, %v1192
  %v1194 = vrot.slane %v1193, 1
  %v1195 = vadd.f32 %v1193, %v1194
  %1196 = vmatprep.subr.mxu0 0.0
  %1197 = vmatpush1.msra.mxu0 %v1170
  %1198 = vmatprep.subr.mxu0 0.0
  %1199 = vmatpush1.msra.mxu0 %v1171
  %1200 = vmatprep.subr.mxu0 0.0
  %1201 = vmatpush1.msra.mxu0 %v1172
  %1202 = vmatprep.subr.mxu0 0.0
  %1203 = vmatpush1.msra.mxu0 %v1173
  %1204 = vmatprep.subr.mxu0 0.0
  %1205 = vmatpush1.msra.mxu0 %v1174
  %1206 = vmatprep.subr.mxu0 0.0
  %1207 = vmatpush1.msra.mxu0 %v1175
  %1208 = vmatprep.subr.mxu0 0.0
  %1209 = vmatpush1.msra.mxu0 %v1176
  %1210 = vmatprep.subr.mxu0 0.0
  %1211 = vmatpush1.msra.mxu0 %v1177
  %1212 = vmatprep.subr.mxu0 0.0
  %1213 = vmatpush1.msra.mxu0 %v1178
  %1214 = vmatprep.subr.mxu0 0.0
  %1215 = vmatpush1.msra.mxu0 %v1179
  %1216 = vmatprep.subr.mxu0 0.0
  %1217 = vmatpush1.msra.mxu0 %v1180
  %1218 = vmatprep.subr.mxu0 0.0
  %1219 = vmatpush1.msra.mxu0 %v1181
  %1220 = vmatprep.subr.mxu0 0.0
  %1221 = vmatpush1.msra.mxu0 %v1182
  %1222 = vmatprep.subr.mxu0 0.0
  %1223 = vmatpush1.msra.mxu0 %v1183
  %1224 = vmatprep.subr.mxu0 0.0
  %1225 = vmatpush1.msra.mxu0 %v1184
  %1226 = vmatprep.subr.mxu0 0.0
  %1227 = vmatpush1.msra.mxu0 %v1185
  %1228 = vmatprep.subr.mxu0 0.0
  %1229 = vmatpush1.msra.mxu0 0.0
  %1230 = vmatprep.subr.mxu0 0.0
  %1231 = vmatpush1.msra.mxu0 0.0
  %1232 = vmatprep.subr.mxu0 0.0
  %1233 = vmatpush1.msra.mxu0 0.0
  %1234 = vmatprep.subr.mxu0 0.0
  %1235 = vmatpush1.msra.mxu0 0.0
  %1236 = vmatprep.subr.mxu0 0.0
  %1237 = vmatpush1.msra.mxu0 0.0
  %1238 = vmatprep.subr.mxu0 0.0
  %1239 = vmatpush1.msra.mxu0 0.0
  %1240 = vmatprep.subr.mxu0 0.0
  %1241 = vmatpush1.msra.mxu0 0.0
  %1242 = vmatprep.subr.mxu0 0.0
  %1243 = vmatpush1.msra.mxu0 0.0
  %1244 = vmatprep.subr.mxu0 0.0
  %1245 = vmatpush1.msra.mxu0 0.0
  %1246 = vmatprep.subr.mxu0 0.0
  %1247 = vmatpush1.msra.mxu0 0.0
  %1248 = vmatprep.subr.mxu0 0.0
  %1249 = vmatpush1.msra.mxu0 0.0
  %1250 = vmatprep.subr.mxu0 0.0
  %1251 = vmatpush1.msra.mxu0 0.0
  %1252 = vmatprep.subr.mxu0 0.0
  %1253 = vmatpush1.msra.mxu0 0.0
  %1254 = vmatprep.subr.mxu0 0.0
  %1255 = vmatpush1.msra.mxu0 0.0
  %1256 = vmatprep.subr.mxu0 0.0
  %1257 = vmatpush1.msra.mxu0 0.0
  %1258 = vmatprep.subr.mxu0 0.0
  %1259 = vmatpush1.msra.mxu0 0.0
  %1260 = vmatprep.mubr.f32.mxu0 0.0
  %1261 = vmatmul.mubr.f32.gmra.mrb[0].mxu0 %v1195
  %v1262 = vpop.f32.mrb[0].mxu0
  %v1263 = vadd.f32 0.0, %v1262
  %v1264 = vpop.f32.mrb[0].mxu0
  %1265 = vdwg.mxu0
  %vm1266 = vcmask 64512
  %v1268 = vsel %vm1266, %v1263, 0
  %1270 = vmatprep.subr.mxu0 0.0
  %1271 = vmatpush1.msra.mxu0 %v1186
  %1272 = vmatprep.subr.mxu0 0.0
  %1273 = vmatpush1.msra.mxu0 0.0
  %1274 = vmatprep.subr.mxu0 0.0
  %1275 = vmatpush1.msra.mxu0 0.0
  %1276 = vmatprep.subr.mxu0 0.0
  %1277 = vmatpush1.msra.mxu0 0.0
  %1278 = vmatprep.subr.mxu0 0.0
  %1279 = vmatpush1.msra.mxu0 0.0
  %1280 = vmatprep.subr.mxu0 0.0
  %1281 = vmatpush1.msra.mxu0 0.0
  %1282 = vmatprep.subr.mxu0 0.0
  %1283 = vmatpush1.msra.mxu0 0.0
  %1284 = vmatprep.subr.mxu0 0.0
  %1285 = vmatpush1.msra.mxu0 0.0
  %1286 = vmatprep.subr.mxu0 0.0
  %1287 = vmatpush1.msra.mxu0 0.0
  %1288 = vmatprep.subr.mxu0 0.0
  %1289 = vmatpush1.msra.mxu0 0.0
  %1290 = vmatprep.subr.mxu0 0.0
  %1291 = vmatpush1.msra.mxu0 0.0
  %1292 = vmatprep.subr.mxu0 0.0
  %1293 = vmatpush1.msra.mxu0 0.0
  %1294 = vmatprep.subr.mxu0 0.0
  %1295 = vmatpush1.msra.mxu0 0.0
  %1296 = vmatprep.subr.mxu0 0.0
  %1297 = vmatpush1.msra.mxu0 0.0
  %1298 = vmatprep.subr.mxu0 0.0
  %1299 = vmatpush1.msra.mxu0 0.0
  %1300 = vmatprep.subr.mxu0 0.0
  %1301 = vmatpush1.msra.mxu0 0.0
  %1302 = vmatprep.subr.mxu0 0.0
  %1303 = vmatpush1.msra.mxu0 0.0
  %1304 = vmatprep.subr.mxu0 0.0
  %1305 = vmatpush1.msra.mxu0 0.0
  %1306 = vmatprep.subr.mxu0 0.0
  %1307 = vmatpush1.msra.mxu0 0.0
  %1308 = vmatprep.subr.mxu0 0.0
  %1309 = vmatpush1.msra.mxu0 0.0
  %1310 = vmatprep.subr.mxu0 0.0
  %1311 = vmatpush1.msra.mxu0 0.0
  %1312 = vmatprep.subr.mxu0 0.0
  %1313 = vmatpush1.msra.mxu0 0.0
  %1314 = vmatprep.subr.mxu0 0.0
  %1315 = vmatpush1.msra.mxu0 0.0
  %1316 = vmatprep.subr.mxu0 0.0
  %1317 = vmatpush1.msra.mxu0 0.0
  %1318 = vmatprep.subr.mxu0 0.0
  %1319 = vmatpush1.msra.mxu0 0.0
  %1320 = vmatprep.subr.mxu0 0.0
  %1321 = vmatpush1.msra.mxu0 0.0
  %1322 = vmatprep.subr.mxu0 0.0
  %1323 = vmatpush1.msra.mxu0 0.0
  %1324 = vmatprep.subr.mxu0 0.0
  %1325 = vmatpush1.msra.mxu0 0.0
  %1326 = vmatprep.subr.mxu0 0.0
  %1327 = vmatpush1.msra.mxu0 0.0
  %1328 = vmatprep.subr.mxu0 0.0
  %1329 = vmatpush1.msra.mxu0 0.0
  %1330 = vmatprep.subr.mxu0 0.0
  %1331 = vmatpush1.msra.mxu0 0.0
  %1332 = vmatprep.subr.mxu0 0.0
  %1333 = vmatpush1.msra.mxu0 0.0
  %1334 = vmatprep.mubr.f32.mxu0 0.0
  %1335 = vmatmul.mubr.f32.gmra.mrb[0].mxu0 %v1268
  %v1336 = vpop.f32.mrb[0].mxu0
  %v1337 = vadd.f32 0.0, %v1336
  %v1338 = vpop.f32.mrb[0].mxu0
  %1339 = vdwg.mxu0
  %v1340 = vlaneseq
  %v1341 = vshrl.u32 %v1340, 7
  %v1342 = vsub.s32 0, %v1341
  %v1343 = vrot.slane %v1337, %v1342
  %v1344 = vsub.f32 %v1166, %v1343
  %v1345 = vsub.f32 %v1167, %v1343
  %v1346 = vsub.f32 %v1168, %v1343
  %v1347 = vsub.f32 %v1169, %v1343
  %v1348 = vmul.f32 %v1344, %v1344
  %v1349 = vmul.f32 %v1345, %v1345
  %v1350 = vmul.f32 %v1346, %v1346
  %v1351 = vmul.f32 %v1347, %v1347
  %v1352 = vadd.f32 %v1348, %v1349
  %v1353 = vadd.f32 %v1352, %v1350
  %v1354 = vadd.f32 %v1353, %v1351
  %v1355 = vrot.slane %v1354, 4
  %v1356 = vadd.f32 %v1354, %v1355
  %v1357 = vrot.slane %v1356, 2
  %v1358 = vadd.f32 %v1356, %v1357
  %v1359 = vrot.slane %v1358, 1
  %v1360 = vadd.f32 %v1358, %v1359
  %v1361 = vld [vmem:[%s7] sm:$0x1]
  %1362 = vmatprep.subr.mxu0 0.0
  %1363 = vmatpush1.msra.mxu0 %v1170
  %1364 = vmatprep.subr.mxu0 0.0
  %1365 = vmatpush1.msra.mxu0 %v1171
  %1366 = vmatprep.subr.mxu0 0.0
  %1367 = vmatpush1.msra.mxu0 %v1172
  %1368 = vmatprep.subr.mxu0 0.0
  %1369 = vmatpush1.msra.mxu0 %v1173
  %1370 = vmatprep.subr.mxu0 0.0
  %1371 = vmatpush1.msra.mxu0 %v1174
  %1372 = vmatprep.subr.mxu0 0.0
  %1373 = vmatpush1.msra.mxu0 %v1175
  %1374 = vmatprep.subr.mxu0 0.0
  %1375 = vmatpush1.msra.mxu0 %v1176
  %1376 = vmatprep.subr.mxu0 0.0
  %1377 = vmatpush1.msra.mxu0 %v1177
  %1378 = vmatprep.subr.mxu0 0.0
  %1379 = vmatpush1.msra.mxu0 %v1178
  %1380 = vmatprep.subr.mxu0 0.0
  %1381 = vmatpush1.msra.mxu0 %v1179
  %1382 = vmatprep.subr.mxu0 0.0
  %1383 = vmatpush1.msra.mxu0 %v1180
  %1384 = vmatprep.subr.mxu0 0.0
  %1385 = vmatpush1.msra.mxu0 %v1181
  %1386 = vmatprep.subr.mxu0 0.0
  %1387 = vmatpush1.msra.mxu0 %v1182
  %1388 = vmatprep.subr.mxu0 0.0
  %1389 = vmatpush1.msra.mxu0 %v1183
  %1390 = vmatprep.subr.mxu0 0.0
  %1391 = vmatpush1.msra.mxu0 %v1184
  %1392 = vmatprep.subr.mxu0 0.0
  %1393 = vmatpush1.msra.mxu0 %v1185
  %1394 = vmatprep.subr.mxu0 0.0
  %1395 = vmatpush1.msra.mxu0 0.0
  %1396 = vmatprep.subr.mxu0 0.0
  %1397 = vmatpush1.msra.mxu0 0.0
  %1398 = vmatprep.subr.mxu0 0.0
  %1399 = vmatpush1.msra.mxu0 0.0
  %1400 = vmatprep.subr.mxu0 0.0
  %1401 = vmatpush1.msra.mxu0 0.0
  %1402 = vmatprep.subr.mxu0 0.0
  %1403 = vmatpush1.msra.mxu0 0.0
  %1404 = vmatprep.subr.mxu0 0.0
  %1405 = vmatpush1.msra.mxu0 0.0
  %1406 = vmatprep.subr.mxu0 0.0
  %1407 = vmatpush1.msra.mxu0 0.0
  %1408 = vmatprep.subr.mxu0 0.0
  %1409 = vmatpush1.msra.mxu0 0.0
  %1410 = vmatprep.subr.mxu0 0.0
  %1411 = vmatpush1.msra.mxu0 0.0
  %1412 = vmatprep.subr.mxu0 0.0
  %1413 = vmatpush1.msra.mxu0 0.0
  %1414 = vmatprep.subr.mxu0 0.0
  %1415 = vmatpush1.msra.mxu0 0.0
  %1416 = vmatprep.subr.mxu0 0.0
  %1417 = vmatpush1.msra.mxu0 0.0
  %1418 = vmatprep.subr.mxu0 0.0
  %1419 = vmatpush1.msra.mxu0 0.0
  %1420 = vmatprep.subr.mxu0 0.0
  %1421 = vmatpush1.msra.mxu0 0.0
  %1422 = vmatprep.subr.mxu0 0.0
  %1423 = vmatpush1.msra.mxu0 0.0
  %1424 = vmatprep.subr.mxu0 0.0
  %1425 = vmatpush1.msra.mxu0 0.0
  %1426 = vmatprep.mubr.f32.mxu0 0.0
  %1427 = vmatmul.mubr.f32.gmra.mrb[0].mxu0 %v1360
  %v1428 = vpop.f32.mrb[0].mxu0
  %v1429 = vadd.f32 1e-05, %v1428
  %v1430 = vpop.f32.mrb[0].mxu0
  %1431 = vdwg.mxu0
  %v1432 = vrsqrt.pop %v1429
  %v1433 = vmul.f32 %v1361, %v1432
  %v1435 = vsel %vm1266, %v1433, 0
  %1437 = vmatprep.subr.mxu0 0.0
  %1438 = vmatpush1.msra.mxu0 %v1186
  %1439 = vmatprep.subr.mxu0 0.0
  %1440 = vmatpush1.msra.mxu0 0.0
  %1441 = vmatprep.subr.mxu0 0.0
  %1442 = vmatpush1.msra.mxu0 0.0
  %1443 = vmatprep.subr.mxu0 0.0
  %1444 = vmatpush1.msra.mxu0 0.0
  %1445 = vmatprep.subr.mxu0 0.0
  %1446 = vmatpush1.msra.mxu0 0.0
  %1447 = vmatprep.subr.mxu0 0.0
  %1448 = vmatpush1.msra.mxu0 0.0
  %1449 = vmatprep.subr.mxu0 0.0
  %1450 = vmatpush1.msra.mxu0 0.0
  %1451 = vmatprep.subr.mxu0 0.0
  %1452 = vmatpush1.msra.mxu0 0.0
  %1453 = vmatprep.subr.mxu0 0.0
  %1454 = vmatpush1.msra.mxu0 0.0
  %1455 = vmatprep.subr.mxu0 0.0
  %1456 = vmatpush1.msra.mxu0 0.0
  %1457 = vmatprep.subr.mxu0 0.0
  %1458 = vmatpush1.msra.mxu0 0.0
  %1459 = vmatprep.subr.mxu0 0.0
  %1460 = vmatpush1.msra.mxu0 0.0
  %1461 = vmatprep.subr.mxu0 0.0
  %1462 = vmatpush1.msra.mxu0 0.0
  %1463 = vmatprep.subr.mxu0 0.0
  %1464 = vmatpush1.msra.mxu0 0.0
  %1465 = vmatprep.subr.mxu0 0.0
  %1466 = vmatpush1.msra.mxu0 0.0
  %1467 = vmatprep.subr.mxu0 0.0
  %1468 = vmatpush1.msra.mxu0 0.0
  %1469 = vmatprep.subr.mxu0 0.0
  %1470 = vmatpush1.msra.mxu0 0.0
  %1471 = vmatprep.subr.mxu0 0.0
  %1472 = vmatpush1.msra.mxu0 0.0
  %1473 = vmatprep.subr.mxu0 0.0
  %1474 = vmatpush1.msra.mxu0 0.0
  %1475 = vmatprep.subr.mxu0 0.0
  %1476 = vmatpush1.msra.mxu0 0.0
  %1477 = vmatprep.subr.mxu0 0.0
  %1478 = vmatpush1.msra.mxu0 0.0
  %1479 = vmatprep.subr.mxu0 0.0
  %1480 = vmatpush1.msra.mxu0 0.0
  %1481 = vmatprep.subr.mxu0 0.0
  %1482 = vmatpush1.msra.mxu0 0.0
  %1483 = vmatprep.subr.mxu0 0.0
  %1484 = vmatpush1.msra.mxu0 0.0
  %1485 = vmatprep.subr.mxu0 0.0
  %1486 = vmatpush1.msra.mxu0 0.0
  %1487 = vmatprep.subr.mxu0 0.0
  %1488 = vmatpush1.msra.mxu0 0.0
  %1489 = vmatprep.subr.mxu0 0.0
  %1490 = vmatpush1.msra.mxu0 0.0
  %1491 = vmatprep.subr.mxu0 0.0
  %1492 = vmatpush1.msra.mxu0 0.0
  %1493 = vmatprep.subr.mxu0 0.0
  %1494 = vmatpush1.msra.mxu0 0.0
  %1495 = vmatprep.subr.mxu0 0.0
  %1496 = vmatpush1.msra.mxu0 0.0
  %1497 = vmatprep.subr.mxu0 0.0
  %1498 = vmatpush1.msra.mxu0 0.0
  %1499 = vmatprep.subr.mxu0 0.0
  %1500 = vmatpush1.msra.mxu0 0.0
  %1501 = vmatprep.mubr.f32.mxu0 0.0
  %1502 = vmatmul.mubr.f32.gmra.mrb[0].mxu0 %v1435
  %v1503 = vpop.f32.mrb[0].mxu0
  %v1504 = vadd.f32 0.0, %v1503
  %v1505 = vpop.f32.mrb[0].mxu0
  %1506 = vdwg.mxu0
  %v1507 = vld [vmem:[%s8] sm:$0x1]
  %v1509 = vsel %vm1266, %v1507, 0
  %1511 = vmatprep.subr.mxu0 0.0
  %1512 = vmatpush1.msra.mxu0 %v1186
  %1513 = vmatprep.subr.mxu0 0.0
  %1514 = vmatpush1.msra.mxu0 0.0
  %1515 = vmatprep.subr.mxu0 0.0
  %1516 = vmatpush1.msra.mxu0 0.0
  %1517 = vmatprep.subr.mxu0 0.0
  %1518 = vmatpush1.msra.mxu0 0.0
  %1519 = vmatprep.subr.mxu0 0.0
  %1520 = vmatpush1.msra.mxu0 0.0
  %1521 = vmatprep.subr.mxu0 0.0
  %1522 = vmatpush1.msra.mxu0 0.0
  %1523 = vmatprep.subr.mxu0 0.0
  %1524 = vmatpush1.msra.mxu0 0.0
  %1525 = vmatprep.subr.mxu0 0.0
  %1526 = vmatpush1.msra.mxu0 0.0
  %1527 = vmatprep.subr.mxu0 0.0
  %1528 = vmatpush1.msra.mxu0 0.0
  %1529 = vmatprep.subr.mxu0 0.0
  %1530 = vmatpush1.msra.mxu0 0.0
  %1531 = vmatprep.subr.mxu0 0.0
  %1532 = vmatpush1.msra.mxu0 0.0
  %1533 = vmatprep.subr.mxu0 0.0
  %1534 = vmatpush1.msra.mxu0 0.0
  %1535 = vmatprep.subr.mxu0 0.0
  %1536 = vmatpush1.msra.mxu0 0.0
  %1537 = vmatprep.subr.mxu0 0.0
  %1538 = vmatpush1.msra.mxu0 0.0
  %1539 = vmatprep.subr.mxu0 0.0
  %1540 = vmatpush1.msra.mxu0 0.0
  %1541 = vmatprep.subr.mxu0 0.0
  %1542 = vmatpush1.msra.mxu0 0.0
  %1543 = vmatprep.subr.mxu0 0.0
  %1544 = vmatpush1.msra.mxu0 0.0
  %1545 = vmatprep.subr.mxu0 0.0
  %1546 = vmatpush1.msra.mxu0 0.0
  %1547 = vmatprep.subr.mxu0 0.0
  %1548 = vmatpush1.msra.mxu0 0.0
  %1549 = vmatprep.subr.mxu0 0.0
  %1550 = vmatpush1.msra.mxu0 0.0
  %1551 = vmatprep.subr.mxu0 0.0
  %1552 = vmatpush1.msra.mxu0 0.0
  %1553 = vmatprep.subr.mxu0 0.0
  %1554 = vmatpush1.msra.mxu0 0.0
  %1555 = vmatprep.subr.mxu0 0.0
  %1556 = vmatpush1.msra.mxu0 0.0
  %1557 = vmatprep.subr.mxu0 0.0
  %1558 = vmatpush1.msra.mxu0 0.0
  %1559 = vmatprep.subr.mxu0 0.0
  %1560 = vmatpush1.msra.mxu0 0.0
  %1561 = vmatprep.subr.mxu0 0.0
  %1562 = vmatpush1.msra.mxu0 0.0
  %1563 = vmatprep.subr.mxu0 0.0
  %1564 = vmatpush1.msra.mxu0 0.0
  %1565 = vmatprep.subr.mxu0 0.0
  %1566 = vmatpush1.msra.mxu0 0.0
  %1567 = vmatprep.subr.mxu0 0.0
  %1568 = vmatpush1.msra.mxu0 0.0
  %1569 = vmatprep.subr.mxu0 0.0
  %1570 = vmatpush1.msra.mxu0 0.0
  %1571 = vmatprep.subr.mxu0 0.0
  %1572 = vmatpush1.msra.mxu0 0.0
  %1573 = vmatprep.subr.mxu0 0.0
  %1574 = vmatpush1.msra.mxu0 0.0
  %1575 = vmatprep.mubr.f32.mxu0 0.0
  %1576 = vmatmul.mubr.f32.gmra.mrb[0].mxu0 %v1509
  %v1577 = vpop.f32.mrb[0].mxu0
  %v1578 = vadd.f32 0.0, %v1577
  %v1579 = vpop.f32.mrb[0].mxu0
  %1580 = vdwg.mxu0
  %v1581 = vlaneseq
  %v1582 = vshrl.u32 %v1581, 7
  %v1583 = vsub.s32 0, %v1582
  %v1584 = vrot.slane %v1504, %v1583
  %v1585 = vmul.f32 %v1344, %v1584
  %v1586 = vmul.f32 %v1345, %v1584
  %v1587 = vmul.f32 %v1346, %v1584
  %v1588 = vmul.f32 %v1347, %v1584
  %v1589 = vlaneseq
  %v1590 = vshrl.u32 %v1589, 7
  %v1591 = vsub.s32 0, %v1590
  %v1592 = vrot.slane %v1578, %v1591
  %v1593 = vadd.f32 %v1585, %v1592
  %v1594 = vadd.f32 %v1586, %v1592
  %v1595 = vadd.f32 %v1587, %v1592
  %v1596 = vadd.f32 %v1588, %v1592
  %1597 = vst [vmem:[%s11] sm:$0xff] %v1593
  %1598 = vst [vmem:[%s11 + $0x8] sm:$0xff] %v1594
  %1599 = vst [vmem:[%s11 + $0x10] sm:$0xff] %v1595
  %1600 = vst [vmem:[%s11 + $0x18] sm:$0xff] %v1596
  // Predicated region
  $region46: #{sep_conv.1} parent=0 // pred_check
    _
  $region47: #{sep_conv.1} parent=0 // pred_check_branch
    %1602 = sbr.rel (0) target = $region49
  $region48: #{sep_conv.1} parent=0 // pred_region
    _
  $region49: #{sep_conv.1} parent=0 // pred_fallthru
    _
  // Predicated region
  $region50: #{sep_conv.1} parent=0 // pred_check
    _
  $region51: #{sep_conv.1} parent=0 // pred_check_branch
    %1604 = sbr.rel (0) target = $region53
  $region52: #{sep_conv.1} parent=0 // pred_region
    _
  $region53: #{sep_conv.1} parent=0 // pred_fallthru
    _

</llo_original>
